<compile_context>
chip_gen: v6e
topology: v6e:2x2x1
jax: 0.10.0
libtpu: 0.0.40
codegen_flags: <defaults>
</compile_context>

<pallas_src>
import functools

import jax
import jax.numpy as jnp
from jax.experimental import pallas as pl
from jax.experimental.pallas import tpu as pltpu


def attention_kernel(x_ref, wq_ref, wk_ref, wv_ref, wo_ref, b_ref, o_ref,
                     acc_ref, *kv_scratch, scale, heads_per_group, head_dim,
                     seq_len, block_q, cache_kv):
    """One (batch, q-row-tile, head-group) grid step.

    x_ref  : (1, Np, C)   full (padded) sequence rows for this batch element
    wq_ref : (NG, C, Gw)  per-group q-projection weights (VMEM resident)
    wk_ref : (NG, C, Gw)
    wv_ref : (NG, C, Gw)
    wo_ref : (NG, Gw, C)  per-group rows of the output projection (resident)
    b_ref  : (1, C)       output-projection bias
    o_ref  : (1, TQ, C)   output rows for this q tile
    acc_ref: (TQ, C) f32  accumulates per-group output-projection contributions
    kv_scratch (only when there is >1 q tile):
      k_sc, v_sc : (NG, Np, Gw)  cached K / V projections for this batch
    """
    qi = pl.program_id(1)
    g = pl.program_id(2)
    num_groups = pl.num_programs(2)

    x = x_ref[0]                                   # (Np, C), compute dtype
    cdt = x.dtype
    n_pad = x.shape[0]

    # --- K / V projection for this head group (hoisted out of the q loop) ---
    if cache_kv:
        k_sc, v_sc = kv_scratch

        @pl.when(qi == 0)
        def _project_kv():
            k_sc[g] = jnp.dot(x, wk_ref[g],
                              preferred_element_type=jnp.float32).astype(cdt)
            v_sc[g] = jnp.dot(x, wv_ref[g],
                              preferred_element_type=jnp.float32).astype(cdt)

        k_g = k_sc[g]                              # (Np, Gw)
        v_g = v_sc[g]
    else:
        k_g = jnp.dot(x, wk_ref[g],
                      preferred_element_type=jnp.float32).astype(cdt)
        v_g = jnp.dot(x, wv_ref[g],
                      preferred_element_type=jnp.float32).astype(cdt)

    # --- Q rows for this tile, sliced from the resident sequence block ------
    if block_q == n_pad:
        xq = x                                     # single q tile: whole block
    else:
        row0 = pl.multiple_of(qi * block_q, block_q)
        xq = x_ref[0, pl.ds(row0, block_q), :]     # (TQ, C)

    # Softmax scale folded into q (O(TQ*Gw) instead of O(TQ*N)).
    q_g = jnp.dot(xq, wq_ref[g],
                  preferred_element_type=jnp.float32) * scale   # (TQ, Gw) f32

    # Key-padding mask (only materialized when the sequence was padded).
    padded = n_pad != seq_len
    if padded:
        key_ok = jax.lax.broadcasted_iota(jnp.int32, (block_q, n_pad), 1) < seq_len
        neg_big = jnp.finfo(jnp.float32).min

    # --- Per-head softmax attention inside the group -------------------------
    ctx_parts = []
    for j in range(heads_per_group):
        lo = j * head_dim
        qj = q_g[:, lo:lo + head_dim].astype(cdt)            # (TQ, hd)
        kj = k_g[:, lo:lo + head_dim]                         # (Np, hd)
        vj = v_g[:, lo:lo + head_dim]                         # (Np, hd)

        # logits: q @ k^T as a transposed-RHS dot_general (no data transpose).
        s = jax.lax.dot_general(
            qj, kj, dimension_numbers=(((1,), (1,)), ((), ())),
            preferred_element_type=jnp.float32)               # (TQ, Np)
        if padded:
            s = jnp.where(key_ok, s, neg_big)

        # Numerically stable softmax; normalization applied to ctx (TQ, hd).
        s = s - jnp.max(s, axis=-1, keepdims=True)
        p = jnp.exp(s)
        denom = jnp.sum(p, axis=-1, keepdims=True)            # (TQ, 1)
        # TODO(synk): attention dropout (att_drop) omitted -- rate is 0.0.

        ctx_j = jnp.dot(p.astype(cdt), vj,
                        preferred_element_type=jnp.float32)   # (TQ, hd) f32
        ctx_parts.append((ctx_j / denom).astype(cdt))         # exact divide

    ctx_g = ctx_parts[0] if len(ctx_parts) == 1 else jnp.concatenate(ctx_parts, axis=1)

    # One MXU-depth-filling output-projection matmul per group (K = Gw).
    part = jnp.dot(ctx_g, wo_ref[g],
                   preferred_element_type=jnp.float32)        # (TQ, C) f32

    @pl.when(g == 0)
    def _init():
        acc_ref[...] = jnp.zeros_like(acc_ref)

    acc_ref[...] += part

    @pl.when(g == num_groups - 1)
    def _finalize():
        out = acc_ref[...] + b_ref[...].astype(jnp.float32)   # (TQ, C)
        # TODO(synk): proj dropout (proj_drop) omitted -- rate is 0.0.
        o_ref[0] = out.astype(o_ref.dtype)


def attention(x, w_qkv, w_proj, b_proj, *, num_heads, q_tile=256,
              heads_per_group=None, compute_dtype=None):
    """Pallas forward of the ViT Attention module.

    x      : (B, N, C)
    w_qkv  : (C, 3C)  JAX (in, out) layout -- transpose of torch's (out, in)
    w_proj : (C, C)
    b_proj : (C,)
    compute_dtype : optional MXU operand dtype (e.g. jnp.bfloat16 on v6e/v7x);
                    accumulation stays f32, output keeps x's dtype.
    """
    B, N, C = x.shape
    H = num_heads
    assert C % H == 0
    hd = C // H
    scale = hd ** (-0.5)
    out_dtype = x.dtype
    cdt = jnp.dtype(compute_dtype) if compute_dtype is not None else jnp.dtype(x.dtype)

    # --- head grouping: group width targets 256 lanes (v6e/v7x MXU width) ---
    if heads_per_group is None:
        G = 1
        for cand in range(1, H + 1):
            if H % cand == 0 and cand * hd <= 256:
                G = cand
    else:
        G = heads_per_group
    assert G >= 1 and H % G == 0
    NG = H // G                      # number of head groups (reduction axis)
    Gw = G * hd                      # group width

    # --- one-time host-side weight re-layout (per-group stacks) -------------
    wq, wk, wv = jnp.split(w_qkv, 3, axis=1)                         # (C, C) each
    regroup = lambda w: w.reshape(C, NG, Gw).transpose(1, 0, 2).astype(cdt)
    wq_g, wk_g, wv_g = regroup(wq), regroup(wk), regroup(wv)         # (NG, C, Gw)
    wo_g = w_proj.reshape(NG, Gw, C).astype(cdt)                     # (NG, Gw, C)
    bias2d = b_proj.reshape(1, C).astype(jnp.float32)

    # --- query-row tiling / sequence padding ---------------------------------
    if N <= q_tile:
        tq, n_pad = N, N
    elif N % q_tile == 0:
        tq, n_pad = q_tile, N
    else:
        tq = q_tile
        n_pad = pl.cdiv(N, q_tile) * q_tile      # pad; keys masked in-kernel
    n_q_tiles = n_pad // tq
    cache_kv = n_q_tiles > 1                     # hoist K/V out of the q loop

    x_c = x.astype(cdt)
    if n_pad != N:
        x_c = jnp.pad(x_c, ((0, 0), (0, n_pad - N), (0, 0)))

    # --- VMEM scratch + explicit VMEM budget ----------------------------------
    scratch_shapes = [pltpu.VMEM((tq, C), jnp.float32)]              # out-proj acc
    if cache_kv:
        scratch_shapes += [pltpu.VMEM((NG, n_pad, Gw), cdt),         # cached K
                           pltpu.VMEM((NG, n_pad, Gw), cdt)]         # cached V

    itm = cdt.itemsize
    est = 2 * (4 * C * C * itm                        # resident weights (dbl-buf)
               + n_pad * C * itm                      # x block (dbl-buf)
               + tq * C * jnp.dtype(out_dtype).itemsize)   # out block (dbl-buf)
    est += tq * C * 4 + (2 * n_pad * C * itm if cache_kv else 0) + C * 4
    # <= 48 MiB is safe on all of v5e/v6e/v7x (v7x VMEM is 64 MiB physical).
    vmem_limit = int(min(max(2 * est, 32 * 1024 * 1024), 48 * 1024 * 1024))

    kernel = functools.partial(
        attention_kernel, scale=scale, heads_per_group=G, head_dim=hd,
        seq_len=N, block_q=tq, cache_kv=cache_kv)

    out = pl.pallas_call(
        kernel,
        out_shape=jax.ShapeDtypeStruct((B, n_pad, C), out_dtype),
        grid_spec=pltpu.PrefetchScalarGridSpec(
            num_scalar_prefetch=0,
            grid=(B, n_q_tiles, NG),                 # head-groups innermost = reduction
            in_specs=[
                pl.BlockSpec((1, n_pad, C), lambda b, qi, g: (b, 0, 0)),   # x (seq rows)
                pl.BlockSpec((NG, C, Gw),   lambda b, qi, g: (0, 0, 0)),   # w_q (resident)
                pl.BlockSpec((NG, C, Gw),   lambda b, qi, g: (0, 0, 0)),   # w_k (resident)
                pl.BlockSpec((NG, C, Gw),   lambda b, qi, g: (0, 0, 0)),   # w_v (resident)
                pl.BlockSpec((NG, Gw, C),   lambda b, qi, g: (0, 0, 0)),   # w_proj (resident)
                pl.BlockSpec((1, C),        lambda b, qi, g: (0, 0)),      # proj bias
            ],
            out_specs=pl.BlockSpec((1, tq, C), lambda b, qi, g: (b, qi, 0)),
            scratch_shapes=scratch_shapes,
        ),
        compiler_params=pltpu.CompilerParams(
            dimension_semantics=(("parallel", "arbitrary", "arbitrary")
                                 if cache_kv else
                                 ("parallel", "parallel", "arbitrary")),
            vmem_limit_bytes=vmem_limit),
    )(x_c, wq_g, wk_g, wv_g, wo_g, bias2d)

    return out if n_pad == N else out[:, :N, :]


def attention_ref(x, w_qkv, w_proj, b_proj, *, num_heads):
    """Pure-JAX reference mirroring the PyTorch forward."""
    B, N, C = x.shape
    hd = C // num_heads
    scale = hd ** (-0.5)
    qkv = x @ w_qkv                                          # (B, N, 3C)
    qkv = qkv.reshape(B, N, 3, num_heads, hd).transpose(2, 0, 3, 1, 4)
    q, k, v = qkv[0], qkv[1], qkv[2]                         # (B, H, N, hd)
    attn = (q @ jnp.swapaxes(k, -2, -1)) * scale
    attn = jax.nn.softmax(attn, axis=-1)
    out = (attn @ v).transpose(0, 2, 1, 3).reshape(B, N, C)
    return out @ w_proj + b_proj


if __name__ == "__main__":
    key = jax.random.PRNGKey(0)

    # --- case 1: dim=32, num_heads=8 (head_dim=4), single q tile -------------
    B, N, C, H = 2, 8, 32, 8
    kx, kq, kp, kb, key = jax.random.split(key, 5)
    x = jax.random.normal(kx, (B, N, C), dtype=jnp.float32)
    # qkv: Linear(dim, 3*dim, bias=False); proj: Linear(dim, dim) with bias.
    w_qkv = jax.random.normal(kq, (C, 3 * C), dtype=jnp.float32) * 0.05
    w_proj = jax.random.normal(kp, (C, C), dtype=jnp.float32) * 0.05
    b_proj = jax.random.normal(kb, (C,), dtype=jnp.float32) * 0.05

    out = jax.block_until_ready(attention(x, w_qkv, w_proj, b_proj, num_heads=H))
    ref = attention_ref(x, w_qkv, w_proj, b_proj, num_heads=H)
    assert jnp.allclose(out, ref, atol=1e-4, rtol=1e-4), "case 1 mismatch vs reference"

    # --- case 2: non-divisible N -> padded + masked keys, multiple q tiles,
    #             K/V cached across q tiles (exercises the general path) ------
    B2, N2, C2, H2 = 1, 40, 32, 4
    kx, kq, kp, kb, key = jax.random.split(key, 5)
    x2 = jax.random.normal(kx, (B2, N2, C2), dtype=jnp.float32)
    w_qkv2 = jax.random.normal(kq, (C2, 3 * C2), dtype=jnp.float32) * 0.05
    w_proj2 = jax.random.normal(kp, (C2, C2), dtype=jnp.float32) * 0.05
    b_proj2 = jax.random.normal(kb, (C2,), dtype=jnp.float32) * 0.05

    out2 = jax.block_until_ready(
        attention(x2, w_qkv2, w_proj2, b_proj2, num_heads=H2, q_tile=16))
    ref2 = attention_ref(x2, w_qkv2, w_proj2, b_proj2, num_heads=H2)
    assert jnp.allclose(out2, ref2, atol=1e-4, rtol=1e-4), "case 2 mismatch vs reference"

    print("KERNEL_OK")
</pallas_src>

<mosaic_0001>
module attributes {stable_mosaic.version = 11 : i64} {
  func.func @attention_kernel(%arg0: i32, %arg1: i32, %arg2: i32, %arg3: memref<1x8x32xf32, #tpu.memory_space<vmem>>, %arg4: memref<1x32x32xf32, #tpu.memory_space<vmem>>, %arg5: memref<1x32x32xf32, #tpu.memory_space<vmem>>, %arg6: memref<1x32x32xf32, #tpu.memory_space<vmem>>, %arg7: memref<1x32x32xf32, #tpu.memory_space<vmem>>, %arg8: memref<1x32xf32, #tpu.memory_space<vmem>>, %arg9: memref<1x8x32xf32, #tpu.memory_space<vmem>>, %arg10: memref<8x32xf32, #tpu.memory_space<vmem>>) attributes {dimension_semantics = [#tpu.dimension_semantics<parallel>, #tpu.dimension_semantics<parallel>, #tpu.dimension_semantics<arbitrary>], iteration_bounds = array<i64: 2, 1, 1>, scalar_prefetch = 0 : i64, scratch_operands = 1 : i64, tpu.core_type = #tpu.core_type<tc>, window_params = [{transform_indices = @transform_0, window_bounds = array<i64: 1, 8, 32>}, {pipeline_mode = #tpu.pipeline_mode<synchronous>, transform_indices = @transform_1, window_bounds = array<i64: 1, 32, 32>}, {pipeline_mode = #tpu.pipeline_mode<synchronous>, transform_indices = @transform_2, window_bounds = array<i64: 1, 32, 32>}, {pipeline_mode = #tpu.pipeline_mode<synchronous>, transform_indices = @transform_3, window_bounds = array<i64: 1, 32, 32>}, {pipeline_mode = #tpu.pipeline_mode<synchronous>, transform_indices = @transform_4, window_bounds = array<i64: 1, 32, 32>}, {pipeline_mode = #tpu.pipeline_mode<synchronous>, transform_indices = @transform_5, window_bounds = array<i64: 1, 32>}, {transform_indices = @transform_6, window_bounds = array<i64: 1, 8, 32>}]} {
    %c0 = arith.constant 0 : index
    %c0_0 = arith.constant 0 : index
    %c0_1 = arith.constant 0 : index
    %0 = vector.load %arg3[%c0, %c0_0, %c0_1] : memref<1x8x32xf32, #tpu.memory_space<vmem>>, vector<1x8x32xf32>
    %1 = vector.shape_cast %0 : vector<1x8x32xf32> to vector<8x32xf32>
    %2 = arith.index_cast %arg2 : i32 to index
    %c0_2 = arith.constant 0 : index
    %c0_3 = arith.constant 0 : index
    %3 = vector.load %arg5[%2, %c0_2, %c0_3] : memref<1x32x32xf32, #tpu.memory_space<vmem>>, vector<1x32x32xf32>
    %4 = vector.shape_cast %3 : vector<1x32x32xf32> to vector<32x32xf32>
    %cst = arith.constant dense<0.000000e+00> : vector<8x32xf32>
    %5 = tpu.matmul %1, %4, %cst {dimension_numbers = #tpu.dot_dimension_numbers<[1], [0], [0], [1], [0, 0, 1, 1], [], []>} : vector<8x32xf32>, vector<32x32xf32>, vector<8x32xf32> -> vector<8x32xf32>
    %6 = arith.index_cast %arg2 : i32 to index
    %c0_4 = arith.constant 0 : index
    %c0_5 = arith.constant 0 : index
    %7 = vector.load %arg6[%6, %c0_4, %c0_5] : memref<1x32x32xf32, #tpu.memory_space<vmem>>, vector<1x32x32xf32>
    %8 = vector.shape_cast %7 : vector<1x32x32xf32> to vector<32x32xf32>
    %cst_6 = arith.constant dense<0.000000e+00> : vector<8x32xf32>
    %9 = tpu.matmul %1, %8, %cst_6 {dimension_numbers = #tpu.dot_dimension_numbers<[1], [0], [0], [1], [0, 0, 1, 1], [], []>} : vector<8x32xf32>, vector<32x32xf32>, vector<8x32xf32> -> vector<8x32xf32>
    %10 = arith.index_cast %arg2 : i32 to index
    %c0_7 = arith.constant 0 : index
    %c0_8 = arith.constant 0 : index
    %11 = vector.load %arg4[%10, %c0_7, %c0_8] : memref<1x32x32xf32, #tpu.memory_space<vmem>>, vector<1x32x32xf32>
    %12 = vector.shape_cast %11 : vector<1x32x32xf32> to vector<32x32xf32>
    %cst_9 = arith.constant dense<0.000000e+00> : vector<8x32xf32>
    %13 = tpu.matmul %1, %12, %cst_9 {dimension_numbers = #tpu.dot_dimension_numbers<[1], [0], [0], [1], [0, 0, 1, 1], [], []>} : vector<8x32xf32>, vector<32x32xf32>, vector<8x32xf32> -> vector<8x32xf32>
    %cst_10 = arith.constant 5.000000e-01 : f32
    %14 = vector.broadcast %cst_10 : f32 to vector<8x32xf32>
    %15 = arith.mulf %13, %14 : vector<8x32xf32>
    %16 = vector.extract_strided_slice %15 {offsets = [0, 0], sizes = [8, 4], strides = [1, 1]} : vector<8x32xf32> to vector<8x4xf32>
    %17 = vector.extract_strided_slice %5 {offsets = [0, 0], sizes = [8, 4], strides = [1, 1]} : vector<8x32xf32> to vector<8x4xf32>
    %18 = vector.extract_strided_slice %9 {offsets = [0, 0], sizes = [8, 4], strides = [1, 1]} : vector<8x32xf32> to vector<8x4xf32>
    %cst_11 = arith.constant dense<0.000000e+00> : vector<8x8xf32>
    %19 = tpu.matmul %16, %17, %cst_11 {dimension_numbers = #tpu.dot_dimension_numbers<[1], [1], [0], [0], [0, 0, 1, 0], [], []>} : vector<8x4xf32>, vector<8x4xf32>, vector<8x8xf32> -> vector<8x8xf32>
    %cst_12 = arith.constant dense<0xFF800000> : vector<8xf32>
    %20 = vector.multi_reduction <maximumf>, %19, %cst_12 [1] : vector<8x8xf32> to vector<8xf32>
    %21 = vector.shape_cast %20 : vector<8xf32> to vector<8x1xf32>
    %22 = vector.broadcast %21 : vector<8x1xf32> to vector<8x8xf32>
    %23 = arith.subf %19, %22 : vector<8x8xf32>
    %24 = math.exp %23 : vector<8x8xf32>
    %cst_13 = arith.constant dense<0.000000e+00> : vector<8xf32>
    %25 = vector.multi_reduction <add>, %24, %cst_13 [1] : vector<8x8xf32> to vector<8xf32>
    %26 = vector.shape_cast %25 : vector<8xf32> to vector<8x1xf32>
    %cst_14 = arith.constant dense<0.000000e+00> : vector<8x4xf32>
    %27 = tpu.matmul %24, %18, %cst_14 {dimension_numbers = #tpu.dot_dimension_numbers<[1], [0], [0], [1], [0, 0, 1, 1], [], []>} : vector<8x8xf32>, vector<8x4xf32>, vector<8x4xf32> -> vector<8x4xf32>
    %28 = vector.broadcast %26 : vector<8x1xf32> to vector<8x4xf32>
    %29 = arith.divf %27, %28 : vector<8x4xf32>
    %30 = vector.extract_strided_slice %15 {offsets = [0, 4], sizes = [8, 4], strides = [1, 1]} : vector<8x32xf32> to vector<8x4xf32>
    %31 = vector.extract_strided_slice %5 {offsets = [0, 4], sizes = [8, 4], strides = [1, 1]} : vector<8x32xf32> to vector<8x4xf32>
    %32 = vector.extract_strided_slice %9 {offsets = [0, 4], sizes = [8, 4], strides = [1, 1]} : vector<8x32xf32> to vector<8x4xf32>
    %cst_15 = arith.constant dense<0.000000e+00> : vector<8x8xf32>
    %33 = tpu.matmul %30, %31, %cst_15 {dimension_numbers = #tpu.dot_dimension_numbers<[1], [1], [0], [0], [0, 0, 1, 0], [], []>} : vector<8x4xf32>, vector<8x4xf32>, vector<8x8xf32> -> vector<8x8xf32>
    %cst_16 = arith.constant dense<0xFF800000> : vector<8xf32>
    %34 = vector.multi_reduction <maximumf>, %33, %cst_16 [1] : vector<8x8xf32> to vector<8xf32>
    %35 = vector.shape_cast %34 : vector<8xf32> to vector<8x1xf32>
    %36 = vector.broadcast %35 : vector<8x1xf32> to vector<8x8xf32>
    %37 = arith.subf %33, %36 : vector<8x8xf32>
    %38 = math.exp %37 : vector<8x8xf32>
    %cst_17 = arith.constant dense<0.000000e+00> : vector<8xf32>
    %39 = vector.multi_reduction <add>, %38, %cst_17 [1] : vector<8x8xf32> to vector<8xf32>
    %40 = vector.shape_cast %39 : vector<8xf32> to vector<8x1xf32>
    %cst_18 = arith.constant dense<0.000000e+00> : vector<8x4xf32>
    %41 = tpu.matmul %38, %32, %cst_18 {dimension_numbers = #tpu.dot_dimension_numbers<[1], [0], [0], [1], [0, 0, 1, 1], [], []>} : vector<8x8xf32>, vector<8x4xf32>, vector<8x4xf32> -> vector<8x4xf32>
    %42 = vector.broadcast %40 : vector<8x1xf32> to vector<8x4xf32>
    %43 = arith.divf %41, %42 : vector<8x4xf32>
    %44 = vector.extract_strided_slice %15 {offsets = [0, 8], sizes = [8, 4], strides = [1, 1]} : vector<8x32xf32> to vector<8x4xf32>
    %45 = vector.extract_strided_slice %5 {offsets = [0, 8], sizes = [8, 4], strides = [1, 1]} : vector<8x32xf32> to vector<8x4xf32>
    %46 = vector.extract_strided_slice %9 {offsets = [0, 8], sizes = [8, 4], strides = [1, 1]} : vector<8x32xf32> to vector<8x4xf32>
    %cst_19 = arith.constant dense<0.000000e+00> : vector<8x8xf32>
    %47 = tpu.matmul %44, %45, %cst_19 {dimension_numbers = #tpu.dot_dimension_numbers<[1], [1], [0], [0], [0, 0, 1, 0], [], []>} : vector<8x4xf32>, vector<8x4xf32>, vector<8x8xf32> -> vector<8x8xf32>
    %cst_20 = arith.constant dense<0xFF800000> : vector<8xf32>
    %48 = vector.multi_reduction <maximumf>, %47, %cst_20 [1] : vector<8x8xf32> to vector<8xf32>
    %49 = vector.shape_cast %48 : vector<8xf32> to vector<8x1xf32>
    %50 = vector.broadcast %49 : vector<8x1xf32> to vector<8x8xf32>
    %51 = arith.subf %47, %50 : vector<8x8xf32>
    %52 = math.exp %51 : vector<8x8xf32>
    %cst_21 = arith.constant dense<0.000000e+00> : vector<8xf32>
    %53 = vector.multi_reduction <add>, %52, %cst_21 [1] : vector<8x8xf32> to vector<8xf32>
    %54 = vector.shape_cast %53 : vector<8xf32> to vector<8x1xf32>
    %cst_22 = arith.constant dense<0.000000e+00> : vector<8x4xf32>
    %55 = tpu.matmul %52, %46, %cst_22 {dimension_numbers = #tpu.dot_dimension_numbers<[1], [0], [0], [1], [0, 0, 1, 1], [], []>} : vector<8x8xf32>, vector<8x4xf32>, vector<8x4xf32> -> vector<8x4xf32>
    %56 = vector.broadcast %54 : vector<8x1xf32> to vector<8x4xf32>
    %57 = arith.divf %55, %56 : vector<8x4xf32>
    %58 = vector.extract_strided_slice %15 {offsets = [0, 12], sizes = [8, 4], strides = [1, 1]} : vector<8x32xf32> to vector<8x4xf32>
    %59 = vector.extract_strided_slice %5 {offsets = [0, 12], sizes = [8, 4], strides = [1, 1]} : vector<8x32xf32> to vector<8x4xf32>
    %60 = vector.extract_strided_slice %9 {offsets = [0, 12], sizes = [8, 4], strides = [1, 1]} : vector<8x32xf32> to vector<8x4xf32>
    %cst_23 = arith.constant dense<0.000000e+00> : vector<8x8xf32>
    %61 = tpu.matmul %58, %59, %cst_23 {dimension_numbers = #tpu.dot_dimension_numbers<[1], [1], [0], [0], [0, 0, 1, 0], [], []>} : vector<8x4xf32>, vector<8x4xf32>, vector<8x8xf32> -> vector<8x8xf32>
    %cst_24 = arith.constant dense<0xFF800000> : vector<8xf32>
    %62 = vector.multi_reduction <maximumf>, %61, %cst_24 [1] : vector<8x8xf32> to vector<8xf32>
    %63 = vector.shape_cast %62 : vector<8xf32> to vector<8x1xf32>
    %64 = vector.broadcast %63 : vector<8x1xf32> to vector<8x8xf32>
    %65 = arith.subf %61, %64 : vector<8x8xf32>
    %66 = math.exp %65 : vector<8x8xf32>
    %cst_25 = arith.constant dense<0.000000e+00> : vector<8xf32>
    %67 = vector.multi_reduction <add>, %66, %cst_25 [1] : vector<8x8xf32> to vector<8xf32>
    %68 = vector.shape_cast %67 : vector<8xf32> to vector<8x1xf32>
    %cst_26 = arith.constant dense<0.000000e+00> : vector<8x4xf32>
    %69 = tpu.matmul %66, %60, %cst_26 {dimension_numbers = #tpu.dot_dimension_numbers<[1], [0], [0], [1], [0, 0, 1, 1], [], []>} : vector<8x8xf32>, vector<8x4xf32>, vector<8x4xf32> -> vector<8x4xf32>
    %70 = vector.broadcast %68 : vector<8x1xf32> to vector<8x4xf32>
    %71 = arith.divf %69, %70 : vector<8x4xf32>
    %72 = vector.extract_strided_slice %15 {offsets = [0, 16], sizes = [8, 4], strides = [1, 1]} : vector<8x32xf32> to vector<8x4xf32>
    %73 = vector.extract_strided_slice %5 {offsets = [0, 16], sizes = [8, 4], strides = [1, 1]} : vector<8x32xf32> to vector<8x4xf32>
    %74 = vector.extract_strided_slice %9 {offsets = [0, 16], sizes = [8, 4], strides = [1, 1]} : vector<8x32xf32> to vector<8x4xf32>
    %cst_27 = arith.constant dense<0.000000e+00> : vector<8x8xf32>
    %75 = tpu.matmul %72, %73, %cst_27 {dimension_numbers = #tpu.dot_dimension_numbers<[1], [1], [0], [0], [0, 0, 1, 0], [], []>} : vector<8x4xf32>, vector<8x4xf32>, vector<8x8xf32> -> vector<8x8xf32>
    %cst_28 = arith.constant dense<0xFF800000> : vector<8xf32>
    %76 = vector.multi_reduction <maximumf>, %75, %cst_28 [1] : vector<8x8xf32> to vector<8xf32>
    %77 = vector.shape_cast %76 : vector<8xf32> to vector<8x1xf32>
    %78 = vector.broadcast %77 : vector<8x1xf32> to vector<8x8xf32>
    %79 = arith.subf %75, %78 : vector<8x8xf32>
    %80 = math.exp %79 : vector<8x8xf32>
    %cst_29 = arith.constant dense<0.000000e+00> : vector<8xf32>
    %81 = vector.multi_reduction <add>, %80, %cst_29 [1] : vector<8x8xf32> to vector<8xf32>
    %82 = vector.shape_cast %81 : vector<8xf32> to vector<8x1xf32>
    %cst_30 = arith.constant dense<0.000000e+00> : vector<8x4xf32>
    %83 = tpu.matmul %80, %74, %cst_30 {dimension_numbers = #tpu.dot_dimension_numbers<[1], [0], [0], [1], [0, 0, 1, 1], [], []>} : vector<8x8xf32>, vector<8x4xf32>, vector<8x4xf32> -> vector<8x4xf32>
    %84 = vector.broadcast %82 : vector<8x1xf32> to vector<8x4xf32>
    %85 = arith.divf %83, %84 : vector<8x4xf32>
    %86 = vector.extract_strided_slice %15 {offsets = [0, 20], sizes = [8, 4], strides = [1, 1]} : vector<8x32xf32> to vector<8x4xf32>
    %87 = vector.extract_strided_slice %5 {offsets = [0, 20], sizes = [8, 4], strides = [1, 1]} : vector<8x32xf32> to vector<8x4xf32>
    %88 = vector.extract_strided_slice %9 {offsets = [0, 20], sizes = [8, 4], strides = [1, 1]} : vector<8x32xf32> to vector<8x4xf32>
    %cst_31 = arith.constant dense<0.000000e+00> : vector<8x8xf32>
    %89 = tpu.matmul %86, %87, %cst_31 {dimension_numbers = #tpu.dot_dimension_numbers<[1], [1], [0], [0], [0, 0, 1, 0], [], []>} : vector<8x4xf32>, vector<8x4xf32>, vector<8x8xf32> -> vector<8x8xf32>
    %cst_32 = arith.constant dense<0xFF800000> : vector<8xf32>
    %90 = vector.multi_reduction <maximumf>, %89, %cst_32 [1] : vector<8x8xf32> to vector<8xf32>
    %91 = vector.shape_cast %90 : vector<8xf32> to vector<8x1xf32>
    %92 = vector.broadcast %91 : vector<8x1xf32> to vector<8x8xf32>
    %93 = arith.subf %89, %92 : vector<8x8xf32>
    %94 = math.exp %93 : vector<8x8xf32>
    %cst_33 = arith.constant dense<0.000000e+00> : vector<8xf32>
    %95 = vector.multi_reduction <add>, %94, %cst_33 [1] : vector<8x8xf32> to vector<8xf32>
    %96 = vector.shape_cast %95 : vector<8xf32> to vector<8x1xf32>
    %cst_34 = arith.constant dense<0.000000e+00> : vector<8x4xf32>
    %97 = tpu.matmul %94, %88, %cst_34 {dimension_numbers = #tpu.dot_dimension_numbers<[1], [0], [0], [1], [0, 0, 1, 1], [], []>} : vector<8x8xf32>, vector<8x4xf32>, vector<8x4xf32> -> vector<8x4xf32>
    %98 = vector.broadcast %96 : vector<8x1xf32> to vector<8x4xf32>
    %99 = arith.divf %97, %98 : vector<8x4xf32>
    %100 = vector.extract_strided_slice %15 {offsets = [0, 24], sizes = [8, 4], strides = [1, 1]} : vector<8x32xf32> to vector<8x4xf32>
    %101 = vector.extract_strided_slice %5 {offsets = [0, 24], sizes = [8, 4], strides = [1, 1]} : vector<8x32xf32> to vector<8x4xf32>
    %102 = vector.extract_strided_slice %9 {offsets = [0, 24], sizes = [8, 4], strides = [1, 1]} : vector<8x32xf32> to vector<8x4xf32>
    %cst_35 = arith.constant dense<0.000000e+00> : vector<8x8xf32>
    %103 = tpu.matmul %100, %101, %cst_35 {dimension_numbers = #tpu.dot_dimension_numbers<[1], [1], [0], [0], [0, 0, 1, 0], [], []>} : vector<8x4xf32>, vector<8x4xf32>, vector<8x8xf32> -> vector<8x8xf32>
    %cst_36 = arith.constant dense<0xFF800000> : vector<8xf32>
    %104 = vector.multi_reduction <maximumf>, %103, %cst_36 [1] : vector<8x8xf32> to vector<8xf32>
    %105 = vector.shape_cast %104 : vector<8xf32> to vector<8x1xf32>
    %106 = vector.broadcast %105 : vector<8x1xf32> to vector<8x8xf32>
    %107 = arith.subf %103, %106 : vector<8x8xf32>
    %108 = math.exp %107 : vector<8x8xf32>
    %cst_37 = arith.constant dense<0.000000e+00> : vector<8xf32>
    %109 = vector.multi_reduction <add>, %108, %cst_37 [1] : vector<8x8xf32> to vector<8xf32>
    %110 = vector.shape_cast %109 : vector<8xf32> to vector<8x1xf32>
    %cst_38 = arith.constant dense<0.000000e+00> : vector<8x4xf32>
    %111 = tpu.matmul %108, %102, %cst_38 {dimension_numbers = #tpu.dot_dimension_numbers<[1], [0], [0], [1], [0, 0, 1, 1], [], []>} : vector<8x8xf32>, vector<8x4xf32>, vector<8x4xf32> -> vector<8x4xf32>
    %112 = vector.broadcast %110 : vector<8x1xf32> to vector<8x4xf32>
    %113 = arith.divf %111, %112 : vector<8x4xf32>
    %114 = vector.extract_strided_slice %15 {offsets = [0, 28], sizes = [8, 4], strides = [1, 1]} : vector<8x32xf32> to vector<8x4xf32>
    %115 = vector.extract_strided_slice %5 {offsets = [0, 28], sizes = [8, 4], strides = [1, 1]} : vector<8x32xf32> to vector<8x4xf32>
    %116 = vector.extract_strided_slice %9 {offsets = [0, 28], sizes = [8, 4], strides = [1, 1]} : vector<8x32xf32> to vector<8x4xf32>
    %cst_39 = arith.constant dense<0.000000e+00> : vector<8x8xf32>
    %117 = tpu.matmul %114, %115, %cst_39 {dimension_numbers = #tpu.dot_dimension_numbers<[1], [1], [0], [0], [0, 0, 1, 0], [], []>} : vector<8x4xf32>, vector<8x4xf32>, vector<8x8xf32> -> vector<8x8xf32>
    %cst_40 = arith.constant dense<0xFF800000> : vector<8xf32>
    %118 = vector.multi_reduction <maximumf>, %117, %cst_40 [1] : vector<8x8xf32> to vector<8xf32>
    %119 = vector.shape_cast %118 : vector<8xf32> to vector<8x1xf32>
    %120 = vector.broadcast %119 : vector<8x1xf32> to vector<8x8xf32>
    %121 = arith.subf %117, %120 : vector<8x8xf32>
    %122 = math.exp %121 : vector<8x8xf32>
    %cst_41 = arith.constant dense<0.000000e+00> : vector<8xf32>
    %123 = vector.multi_reduction <add>, %122, %cst_41 [1] : vector<8x8xf32> to vector<8xf32>
    %124 = vector.shape_cast %123 : vector<8xf32> to vector<8x1xf32>
    %cst_42 = arith.constant dense<0.000000e+00> : vector<8x4xf32>
    %125 = tpu.matmul %122, %116, %cst_42 {dimension_numbers = #tpu.dot_dimension_numbers<[1], [0], [0], [1], [0, 0, 1, 1], [], []>} : vector<8x8xf32>, vector<8x4xf32>, vector<8x4xf32> -> vector<8x4xf32>
    %126 = vector.broadcast %124 : vector<8x1xf32> to vector<8x4xf32>
    %127 = arith.divf %125, %126 : vector<8x4xf32>
    %128 = tpu.concatenate %29, %43, %57, %71, %85, %99, %113, %127 in 1 : vector<8x4xf32>, vector<8x4xf32>, vector<8x4xf32>, vector<8x4xf32>, vector<8x4xf32>, vector<8x4xf32>, vector<8x4xf32>, vector<8x4xf32> -> vector<8x32xf32>
    %129 = arith.index_cast %arg2 : i32 to index
    %c0_43 = arith.constant 0 : index
    %c0_44 = arith.constant 0 : index
    %130 = vector.load %arg7[%129, %c0_43, %c0_44] : memref<1x32x32xf32, #tpu.memory_space<vmem>>, vector<1x32x32xf32>
    %131 = vector.shape_cast %130 : vector<1x32x32xf32> to vector<32x32xf32>
    %cst_45 = arith.constant dense<0.000000e+00> : vector<8x32xf32>
    %132 = tpu.matmul %128, %131, %cst_45 {dimension_numbers = #tpu.dot_dimension_numbers<[1], [0], [0], [1], [0, 0, 1, 1], [], []>} : vector<8x32xf32>, vector<32x32xf32>, vector<8x32xf32> -> vector<8x32xf32>
    %c0_i32 = arith.constant 0 : i32
    %133 = arith.cmpi eq, %arg2, %c0_i32 : i32
    %134 = arith.extui %133 : i1 to i32
    %c0_i32_46 = arith.constant 0 : i32
    %135 = arith.cmpi ne, %134, %c0_i32_46 : i32
    scf.if %135 {
      %cst_53 = arith.constant 0.000000e+00 : f32
      %142 = vector.broadcast %cst_53 : f32 to vector<8x32xf32>
      %c0_54 = arith.constant 0 : index
      %c0_55 = arith.constant 0 : index
      %143 = vector.load %arg10[%c0_54, %c0_55] : memref<8x32xf32, #tpu.memory_space<vmem>>, vector<8x32xf32>
      tpu.vector_store %arg10[%c0_54, %c0_55], %142 {strides = array<i32>} : memref<8x32xf32, #tpu.memory_space<vmem>>, vector<8x32xf32>,
    } else {
    }
    %c0_47 = arith.constant 0 : index
    %c0_48 = arith.constant 0 : index
    %136 = vector.load %arg10[%c0_47, %c0_48] : memref<8x32xf32, #tpu.memory_space<vmem>>, vector<8x32xf32>
    %137 = arith.addf %136, %132 : vector<8x32xf32>
    %c0_49 = arith.constant 0 : index
    %c0_50 = arith.constant 0 : index
    %138 = vector.load %arg10[%c0_49, %c0_50] : memref<8x32xf32, #tpu.memory_space<vmem>>, vector<8x32xf32>
    tpu.vector_store %arg10[%c0_49, %c0_50], %137 {strides = array<i32>} : memref<8x32xf32, #tpu.memory_space<vmem>>, vector<8x32xf32>,
    %c0_i32_51 = arith.constant 0 : i32
    %139 = arith.cmpi eq, %arg2, %c0_i32_51 : i32
    %140 = arith.extui %139 : i1 to i32
    %c0_i32_52 = arith.constant 0 : i32
    %141 = arith.cmpi ne, %140, %c0_i32_52 : i32
    scf.if %141 {
      %c0_53 = arith.constant 0 : index
      %c0_54 = arith.constant 0 : index
      %142 = vector.load %arg10[%c0_53, %c0_54] : memref<8x32xf32, #tpu.memory_space<vmem>>, vector<8x32xf32>
      %c0_55 = arith.constant 0 : index
      %c0_56 = arith.constant 0 : index
      %143 = vector.load %arg8[%c0_55, %c0_56] : memref<1x32xf32, #tpu.memory_space<vmem>>, vector<1x32xf32>
      %144 = vector.broadcast %143 : vector<1x32xf32> to vector<8x32xf32>
      %145 = arith.addf %142, %144 : vector<8x32xf32>
      %c0_57 = arith.constant 0 : index
      %c0_58 = arith.constant 0 : index
      %c0_59 = arith.constant 0 : index
      %146 = vector.load %arg9[%c0_57, %c0_58, %c0_59] : memref<1x8x32xf32, #tpu.memory_space<vmem>>, vector<1x8x32xf32>
      %147 = vector.shape_cast %146 : vector<1x8x32xf32> to vector<8x32xf32>
      %148 = vector.shape_cast %145 : vector<8x32xf32> to vector<1x8x32xf32>
      tpu.vector_store %arg9[%c0_57, %c0_58, %c0_59], %148 {strides = array<i32>} : memref<1x8x32xf32, #tpu.memory_space<vmem>>, vector<1x8x32xf32>,
    } else {
    }
    return
  }
  func.func @transform_0(%arg0: i32, %arg1: i32, %arg2: i32) -> (i32, i32, i32) {
    %c0_i32 = arith.constant 0 : i32
    %c0_i32_0 = arith.constant 0 : i32
    %c0_i32_1 = arith.constant 0 : i32
    return %arg0, %c0_i32, %c0_i32_0 : i32, i32, i32
  }
  func.func @transform_1(%arg0: i32, %arg1: i32, %arg2: i32) -> (i32, i32, i32) {
    %c0_i32 = arith.constant 0 : i32
    %c0_i32_0 = arith.constant 0 : i32
    %c0_i32_1 = arith.constant 0 : i32
    %c0_i32_2 = arith.constant 0 : i32
    return %c0_i32, %c0_i32_0, %c0_i32_1 : i32, i32, i32
  }
  func.func @transform_2(%arg0: i32, %arg1: i32, %arg2: i32) -> (i32, i32, i32) {
    %c0_i32 = arith.constant 0 : i32
    %c0_i32_0 = arith.constant 0 : i32
    %c0_i32_1 = arith.constant 0 : i32
    %c0_i32_2 = arith.constant 0 : i32
    return %c0_i32, %c0_i32_0, %c0_i32_1 : i32, i32, i32
  }
  func.func @transform_3(%arg0: i32, %arg1: i32, %arg2: i32) -> (i32, i32, i32) {
    %c0_i32 = arith.constant 0 : i32
    %c0_i32_0 = arith.constant 0 : i32
    %c0_i32_1 = arith.constant 0 : i32
    %c0_i32_2 = arith.constant 0 : i32
    return %c0_i32, %c0_i32_0, %c0_i32_1 : i32, i32, i32
  }
  func.func @transform_4(%arg0: i32, %arg1: i32, %arg2: i32) -> (i32, i32, i32) {
    %c0_i32 = arith.constant 0 : i32
    %c0_i32_0 = arith.constant 0 : i32
    %c0_i32_1 = arith.constant 0 : i32
    %c0_i32_2 = arith.constant 0 : i32
    return %c0_i32, %c0_i32_0, %c0_i32_1 : i32, i32, i32
  }
  func.func @transform_5(%arg0: i32, %arg1: i32, %arg2: i32) -> (i32, i32) {
    %c0_i32 = arith.constant 0 : i32
    %c0_i32_0 = arith.constant 0 : i32
    %c0_i32_1 = arith.constant 0 : i32
    return %c0_i32, %c0_i32_0 : i32, i32
  }
  func.func @transform_6(%arg0: i32, %arg1: i32, %arg2: i32) -> (i32, i32, i32) {
    %c0_i32 = arith.constant 0 : i32
    %c0_i32_0 = arith.constant 0 : i32
    return %arg0, %arg1, %c0_i32 : i32, i32, i32
  }
}

</mosaic_0001>

<llo_original>
// kernel: tpu_custom_call.1
$region0: #{tpu_custom_call.1}
  #allocation0 [shape = 'u32[]', space=smem, size = 0x4, offset = 0x4, fixed_abs, tag = 'smem constant byte address 0x4 - core index']
  #allocation1 [shape = 'u32[144,128]{1,0:T(1,128)}', space=vmem, size = 0x12000, scoped, tag = 'internal scratch']
  #allocation2 [shape = 'f32[8,32]{1,0:T(8,128)}', space=vmem, size = 0x1000, scoped, tag = 'scratch operand']
  %s0 = inlined_call_operand.hbm [shape: f32[2,8,32], index: 0, kind: input, shape index: {}]
  %s1 = inlined_call_operand.hbm [shape: f32[1,32,32], index: 1, kind: input, shape index: {}]
  %s2 = inlined_call_operand.hbm [shape: f32[1,32,32], index: 2, kind: input, shape index: {}]
  %s3 = inlined_call_operand.hbm [shape: f32[1,32,32], index: 3, kind: input, shape index: {}]
  %s4 = inlined_call_operand.hbm [shape: f32[1,32,32], index: 4, kind: input, shape index: {}]
  %s5 = inlined_call_operand.vmem [shape: f32[1,32], index: 5, kind: input, shape index: {}]
  %s6 = inlined_call_operand.hbm [shape: f32[2,8,32], index: 6, kind: output, shape index: {}]
  %s7 = sld [smem:[#allocation0]]
  $region85: #{tpu_custom_call.1} parent=0
    _
  %s9 = ssub.s32 1, %s7
  %s10 = scalar_select 0, %s9, %s7
  $region1: #{tpu_custom_call.1} parent=0
    #allocation3 [shape = 'u8[8192]{0}', space=vmem, size = 0x2000, scoped, tag = 'input window, operand 0']
    #allocation4 [shape = 's32[2]{0}', space=sflag, size = 0x8, scoped, tag = 'scoped memory for tpu_custom_call.1']
    #allocation5 [shape = 's32[2]{0}', space=sflag, size = 0x8, scoped, tag = 'scoped memory for tpu_custom_call.1']
    #allocation6 [shape = 'u8[16384]{0}', space=vmem, size = 0x4000, scoped, tag = 'input window, operand 1, single buffered']
    #allocation7 [shape = 's32[1]{0}', space=sflag, size = 0x4, scoped, tag = 'scoped memory for tpu_custom_call.1']
    #allocation8 [shape = 'u8[16384]{0}', space=vmem, size = 0x4000, scoped, tag = 'input window, operand 2, single buffered']
    #allocation9 [shape = 'u8[16384]{0}', space=vmem, size = 0x4000, scoped, tag = 'input window, operand 3, single buffered']
    #allocation10 [shape = 's32[1]{0}', space=sflag, size = 0x4, scoped, tag = 'scoped memory for tpu_custom_call.1']
    #allocation11 [shape = 'u8[16384]{0}', space=vmem, size = 0x4000, scoped, tag = 'input window, operand 4, single buffered']
    #allocation12 [shape = 'u8[8192]{0}', space=vmem, size = 0x2000, scoped, tag = 'output window, operand 0']
    %11 = vsyncpa [#allocation4], 0
    %s12 = scalar_lea.sflag [#allocation4], 1
    %13 = vsyncpa %s12, 0
    %14 = vsyncpa [#allocation7], 0
    %15 = vsyncpa [#allocation10], 0
    %16 = vsyncpa [#allocation5], 0
    %s17 = scalar_lea.sflag [#allocation5], 1
    %18 = vsyncpa %s17, 0
    loop: start=0, step=1, limit=4
    $region2: #{tpu_custom_call.1} parent=1 // loop_pre_header
      _
    $region3: #{tpu_custom_call.1} parent=1 // loop_header
      %s20 = sphi 0, %s24
      %p21 = scmp.ge.s32.totalorder %s20, 4
      %s27 = sphi 0, %s46
      %s28 = sphi 0, %s42
      %s29 = sphi 0, %s38
      %s30 = sphi 0, %s27
      %s31 = sphi 0, %s28
      %s32 = sphi 0, %s29
      %s33 = sphi 0, %s30
      %s34 = sphi 0, %s31
      %s35 = sphi 0, %s32
      %s49 = sphi 0, %s51
      %s52 = sphi 0, %s49
      %s53 = sphi 0, %s52
      %s69 = sphi 0, %s53
      %s73 = sphi 0, %s73
      %s75 = sphi 0, %s73
      %s76 = sphi 0, %s75
      %s90 = sphi 0, %s76
      %s94 = sphi 0, %s94
      %s96 = sphi 0, %s94
      %s97 = sphi 0, %s96
      %s111 = sphi 0, %s97
      %s115 = sphi 0, %s115
      %s117 = sphi 0, %s115
      %s118 = sphi 0, %s117
      %s132 = sphi 0, %s118
      %s136 = sphi 0, %s136
      %s138 = sphi 0, %s136
      %s139 = sphi 0, %s138
      %s153 = sphi 0, %s139
      %s157 = sphi 0, %s157
      %s159 = sphi 0, %s157
      %s160 = sphi 0, %s159
      %s174 = sphi 0, %s160
      %s182 = sphi 0, %s184
      %s185 = sphi 0, %s182
      %s186 = sphi 0, %s185
      %s202 = sphi 0, %s186
    $region4: #{tpu_custom_call.1} parent=1 // loop_header_branch
      %23 = sbr.rel (%p21) target = $region8
    $region5: #{tpu_custom_call.1} parent=1 // loop_body
      %s25 = ssub.s32 %s20, 1
      %s26 = ssub.s32 %s20, 2
      %s36 = sadd.s32 1, %s29
      %p37 = scmp.ge.s32.totalorder %s36, 1
      %s38 = scalar_select %p37, 0, %s36
      %s39 = sadd.s32 1, %s28
      %s40 = scalar_select %p37, %s39, %s28
      %p41 = scmp.ge.s32.totalorder %s40, 1
      %s42 = scalar_select %p41, 0, %s40
      %s43 = sadd.s32 1, %s27
      %s44 = scalar_select %p41, %s43, %s27
      %p45 = scmp.ge.s32.totalorder %s44, 2
      %s46 = scalar_select %p45, 0, %s44
      %s47 = ssub.s32 %s27, %s46
      %p48 = scmp.eq.s32.totalorder %s47, 0
      %s50 = sadd.s32 %s49, 1
      %s51 = scalar_select %p48, %s49, %s50
      %p54 = pneg %p48
      %p55 = scmp.eq.s32.totalorder %s20, 1
      %p56 = por %p54, %p55
      %p57 = scmp.ne.s32.totalorder %s49, %s52
      %p58 = scmp.eq.s32.totalorder %s20, 0
      %p59 = por %p57, %p58
      %p60 = scmp.ne.s32.totalorder %s49, %s52
      %p61 = scmp.eq.s32.totalorder %s25, 1
      %p62 = por %p60, %p61
      %p63 = scmp.ne.s32.totalorder %s52, %s53
      %p64 = scmp.eq.s32.totalorder %s25, 0
      %p65 = por %p63, %p64
      %p66 = scmp.ne.s32.totalorder %s52, %s53
      %p67 = scmp.eq.s32.totalorder %s26, 1
      %p68 = por %p66, %p67
      %p70 = scmp.ne.s32.totalorder %s53, %s69
      %p71 = scmp.eq.s32.totalorder %s26, 0
      %p72 = por %p70, %p71
      %s74 = sadd.s32 %s73, 1
      %p77 = scmp.eq.s32.totalorder %s20, 1
      %p78 = scmp.ne.s32.totalorder %s73, %s75
      %p79 = scmp.eq.s32.totalorder %s20, 0
      %p80 = por %p78, %p79
      %p81 = scmp.ne.s32.totalorder %s73, %s75
      %p82 = scmp.eq.s32.totalorder %s25, 1
      %p83 = por %p81, %p82
      %p84 = scmp.ne.s32.totalorder %s75, %s76
      %p85 = scmp.eq.s32.totalorder %s25, 0
      %p86 = por %p84, %p85
      %p87 = scmp.ne.s32.totalorder %s75, %s76
      %p88 = scmp.eq.s32.totalorder %s26, 1
      %p89 = por %p87, %p88
      %p91 = scmp.ne.s32.totalorder %s76, %s90
      %p92 = scmp.eq.s32.totalorder %s26, 0
      %p93 = por %p91, %p92
      %s95 = sadd.s32 %s94, 1
      %p98 = scmp.eq.s32.totalorder %s20, 1
      %p99 = scmp.ne.s32.totalorder %s94, %s96
      %p100 = scmp.eq.s32.totalorder %s20, 0
      %p101 = por %p99, %p100
      %p102 = scmp.ne.s32.totalorder %s94, %s96
      %p103 = scmp.eq.s32.totalorder %s25, 1
      %p104 = por %p102, %p103
      %p105 = scmp.ne.s32.totalorder %s96, %s97
      %p106 = scmp.eq.s32.totalorder %s25, 0
      %p107 = por %p105, %p106
      %p108 = scmp.ne.s32.totalorder %s96, %s97
      %p109 = scmp.eq.s32.totalorder %s26, 1
      %p110 = por %p108, %p109
      %p112 = scmp.ne.s32.totalorder %s97, %s111
      %p113 = scmp.eq.s32.totalorder %s26, 0
      %p114 = por %p112, %p113
      %s116 = sadd.s32 %s115, 1
      %p119 = scmp.eq.s32.totalorder %s20, 1
      %p120 = scmp.ne.s32.totalorder %s115, %s117
      %p121 = scmp.eq.s32.totalorder %s20, 0
      %p122 = por %p120, %p121
      %p123 = scmp.ne.s32.totalorder %s115, %s117
      %p124 = scmp.eq.s32.totalorder %s25, 1
      %p125 = por %p123, %p124
      %p126 = scmp.ne.s32.totalorder %s117, %s118
      %p127 = scmp.eq.s32.totalorder %s25, 0
      %p128 = por %p126, %p127
      %p129 = scmp.ne.s32.totalorder %s117, %s118
      %p130 = scmp.eq.s32.totalorder %s26, 1
      %p131 = por %p129, %p130
      %p133 = scmp.ne.s32.totalorder %s118, %s132
      %p134 = scmp.eq.s32.totalorder %s26, 0
      %p135 = por %p133, %p134
      %s137 = sadd.s32 %s136, 1
      %p140 = scmp.eq.s32.totalorder %s20, 1
      %p141 = scmp.ne.s32.totalorder %s136, %s138
      %p142 = scmp.eq.s32.totalorder %s20, 0
      %p143 = por %p141, %p142
      %p144 = scmp.ne.s32.totalorder %s136, %s138
      %p145 = scmp.eq.s32.totalorder %s25, 1
      %p146 = por %p144, %p145
      %p147 = scmp.ne.s32.totalorder %s138, %s139
      %p148 = scmp.eq.s32.totalorder %s25, 0
      %p149 = por %p147, %p148
      %p150 = scmp.ne.s32.totalorder %s138, %s139
      %p151 = scmp.eq.s32.totalorder %s26, 1
      %p152 = por %p150, %p151
      %p154 = scmp.ne.s32.totalorder %s139, %s153
      %p155 = scmp.eq.s32.totalorder %s26, 0
      %p156 = por %p154, %p155
      %s158 = sadd.s32 %s157, 1
      %p161 = scmp.eq.s32.totalorder %s20, 1
      %p162 = scmp.ne.s32.totalorder %s157, %s159
      %p163 = scmp.eq.s32.totalorder %s20, 0
      %p164 = por %p162, %p163
      %p165 = scmp.ne.s32.totalorder %s157, %s159
      %p166 = scmp.eq.s32.totalorder %s25, 1
      %p167 = por %p165, %p166
      %p168 = scmp.ne.s32.totalorder %s159, %s160
      %p169 = scmp.eq.s32.totalorder %s25, 0
      %p170 = por %p168, %p169
      %p171 = scmp.ne.s32.totalorder %s159, %s160
      %p172 = scmp.eq.s32.totalorder %s26, 1
      %p173 = por %p171, %p172
      %p175 = scmp.ne.s32.totalorder %s160, %s174
      %p176 = scmp.eq.s32.totalorder %s26, 0
      %p177 = por %p175, %p176
      %s178 = ssub.s32 %s27, %s46
      %s179 = ssub.s32 %s28, %s42
      %s180 = sor.u32 %s178, %s179
      %p181 = scmp.eq.s32.totalorder %s180, 0
      %s183 = sadd.s32 %s182, 1
      %s184 = scalar_select %p181, %s182, %s183
      %p187 = pneg %p181
      %p188 = scmp.eq.s32.totalorder %s20, 1
      %p189 = por %p187, %p188
      %p190 = scmp.ne.s32.totalorder %s182, %s185
      %p191 = scmp.eq.s32.totalorder %s20, 0
      %p192 = por %p190, %p191
      %p193 = scmp.ne.s32.totalorder %s182, %s185
      %p194 = scmp.eq.s32.totalorder %s25, 1
      %p195 = por %p193, %p194
      %p196 = scmp.ne.s32.totalorder %s185, %s186
      %p197 = scmp.eq.s32.totalorder %s25, 0
      %p198 = por %p196, %p197
      %p199 = scmp.ne.s32.totalorder %s185, %s186
      %p200 = scmp.eq.s32.totalorder %s26, 1
      %p201 = por %p199, %p200
      %p203 = scmp.ne.s32.totalorder %s186, %s202
      %p204 = scmp.eq.s32.totalorder %s26, 0
      %p205 = por %p203, %p204
      %p206 = scmp.le.s32.totalorder 1, %s20
      %p207 = scmp.lt.s32.totalorder %s20, 3
      %p208 = pnand %p206, %p207
      %p209 = pneg %p208
      // Predicated region
      $region9: #{tpu_custom_call.1} parent=5 // pred_check
        _
      $region10: #{tpu_custom_call.1} parent=5 // pred_check_branch
        %211 = sbr.rel (%p208) target = $region12
      $region11: #{tpu_custom_call.1} parent=5 // pred_region
        %s212 = ssub.s32 %s20, 1
        // Predicated region
        $region13: #{tpu_custom_call.1} parent=11 // pred_check
          %p213 = pneg %p86
        $region14: #{tpu_custom_call.1} parent=11 // pred_check_branch
          %215 = sbr.rel (%p213) target = $region16
        $region15: #{tpu_custom_call.1} parent=11 // pred_region
          %s217 = ssub.s32 512, 512
          %218 = vsyncadd [#allocation7], %s217
          %s219 = sshll.u32 [#allocation6], 4
          %s220 = int_to_ptr.vmem [resolvable:$true] %s219
          %225 = dma.hbm_to_vmem [thread:$0]  %s1, 512, %s220, [#allocation7], 128, 128, 8
        $region16: #{tpu_custom_call.1} parent=11 // pred_fallthru
          _
        // Predicated region
        $region17: #{tpu_custom_call.1} parent=11 // pred_check
          %p226 = pneg %p107
        $region18: #{tpu_custom_call.1} parent=11 // pred_check_branch
          %228 = sbr.rel (%p226) target = $region20
        $region19: #{tpu_custom_call.1} parent=11 // pred_region
          %s230 = ssub.s32 512, 512
          %231 = vsyncadd [#allocation7], %s230
          %s232 = sshll.u32 [#allocation8], 4
          %s233 = int_to_ptr.vmem [resolvable:$true] %s232
          %238 = dma.hbm_to_vmem [thread:$0]  %s2, 512, %s233, [#allocation7], 128, 128, 8
        $region20: #{tpu_custom_call.1} parent=11 // pred_fallthru
          _
        // Predicated region
        $region21: #{tpu_custom_call.1} parent=11 // pred_check
          %p239 = pneg %p128
        $region22: #{tpu_custom_call.1} parent=11 // pred_check_branch
          %241 = sbr.rel (%p239) target = $region24
        $region23: #{tpu_custom_call.1} parent=11 // pred_region
          %s243 = ssub.s32 512, 512
          %244 = vsyncadd [#allocation10], %s243
          %s245 = sshll.u32 [#allocation9], 4
          %s246 = int_to_ptr.vmem [resolvable:$true] %s245
          %251 = dma.hbm_to_vmem [thread:$0]  %s3, 512, %s246, [#allocation10], 128, 128, 8
        $region24: #{tpu_custom_call.1} parent=11 // pred_fallthru
          _
        // Predicated region
        $region25: #{tpu_custom_call.1} parent=11 // pred_check
          %p252 = pneg %p149
        $region26: #{tpu_custom_call.1} parent=11 // pred_check_branch
          %254 = sbr.rel (%p252) target = $region28
        $region27: #{tpu_custom_call.1} parent=11 // pred_region
          %s256 = ssub.s32 512, 512
          %257 = vsyncadd [#allocation10], %s256
          %s258 = sshll.u32 [#allocation11], 4
          %s259 = int_to_ptr.vmem [resolvable:$true] %s258
          %264 = dma.hbm_to_vmem [thread:$0]  %s4, 512, %s259, [#allocation10], 128, 128, 8
        $region28: #{tpu_custom_call.1} parent=11 // pred_fallthru
          _
        // Predicated region
        $region29: #{tpu_custom_call.1} parent=11 // pred_check
          %p265 = pneg %p170
        $region30: #{tpu_custom_call.1} parent=11 // pred_check_branch
          %267 = sbr.rel (%p265) target = $region32
        $region31: #{tpu_custom_call.1} parent=11 // pred_region
          _
        $region32: #{tpu_custom_call.1} parent=11 // pred_fallthru
          _
      $region12: #{tpu_custom_call.1} parent=5 // pred_fallthru
        _
      %p268 = scmp.lt.s32.totalorder %s20, 2
      // Predicated region
      $region33: #{tpu_custom_call.1} parent=5 // pred_check
        %p269 = pneg %p268
      $region34: #{tpu_custom_call.1} parent=5 // pred_check_branch
        %271 = sbr.rel (%p269) target = $region36
      $region35: #{tpu_custom_call.1} parent=5 // pred_region
        // Predicated region
        $region37: #{tpu_custom_call.1} parent=35 // pred_check
          %p272 = pneg %p59
        $region38: #{tpu_custom_call.1} parent=35 // pred_check_branch
          %274 = sbr.rel (%p272) target = $region40
        $region39: #{tpu_custom_call.1} parent=35 // pred_region
          %s275 = sand.u32 %s49, 1
          %s276 = scalar_lea.sflag [#allocation4], %s275
          %s277 = sand.u32 %s49, 1
          %s278 = smul.addr %s277, 8
          %s279 = scalar_lea.vmem [#allocation3], %s278
          %s281 = ssub.s32 128, 128
          %282 = vsyncadd %s276, %s281
          %s283 = smul.addr %s27, 128
          %s284 = scalar_lea.hbm %s0, %s283
          %s286 = sshll.u32 %s279, 4
          %s287 = int_to_ptr.vmem [resolvable:$true] %s286
          %289 = dma.hbm_to_vmem [thread:$0]  %s284, 128, %s287, %s276
        $region40: #{tpu_custom_call.1} parent=35 // pred_fallthru
          _
      $region36: #{tpu_custom_call.1} parent=5 // pred_fallthru
        _
      %p290 = scmp.le.s32.totalorder 1, %s20
      %p291 = scmp.lt.s32.totalorder %s20, 3
      %p292 = pnand %p290, %p291
      %p293 = pneg %p292
      // Predicated region
      $region41: #{tpu_custom_call.1} parent=5 // pred_check
        _
      $region42: #{tpu_custom_call.1} parent=5 // pred_check_branch
        %295 = sbr.rel (%p292) target = $region44
      $region43: #{tpu_custom_call.1} parent=5 // pred_region
        %s296 = ssub.s32 %s20, 1
        %s297 = sand.u32 %s52, 1
        %s298 = scalar_lea.sflag [#allocation4], %s297
        %s299 = sand.u32 %s52, 1
        %s300 = smul.addr %s299, 8
        %s301 = scalar_lea.vmem [#allocation3], %s300
        // Predicated region
        $region45: #{tpu_custom_call.1} parent=43 // pred_check
          %p302 = pneg %p65
        $region46: #{tpu_custom_call.1} parent=43 // pred_check_branch
          %304 = sbr.rel (%p302) target = $region48
        $region47: #{tpu_custom_call.1} parent=43 // pred_region
          %305 = dma.done %s298, 128
        $region48: #{tpu_custom_call.1} parent=43 // pred_fallthru
          _
        // Predicated region
        $region49: #{tpu_custom_call.1} parent=43 // pred_check
          %p306 = pneg %p86
        $region50: #{tpu_custom_call.1} parent=43 // pred_check_branch
          %308 = sbr.rel (%p306) target = $region52
        $region51: #{tpu_custom_call.1} parent=43 // pred_region
          %309 = dma.done [#allocation7], 512
        $region52: #{tpu_custom_call.1} parent=43 // pred_fallthru
          _
        // Predicated region
        $region53: #{tpu_custom_call.1} parent=43 // pred_check
          %p310 = pneg %p107
        $region54: #{tpu_custom_call.1} parent=43 // pred_check_branch
          %312 = sbr.rel (%p310) target = $region56
        $region55: #{tpu_custom_call.1} parent=43 // pred_region
          %313 = dma.done [#allocation7], 512
        $region56: #{tpu_custom_call.1} parent=43 // pred_fallthru
          _
        // Predicated region
        $region57: #{tpu_custom_call.1} parent=43 // pred_check
          %p314 = pneg %p128
        $region58: #{tpu_custom_call.1} parent=43 // pred_check_branch
          %316 = sbr.rel (%p314) target = $region60
        $region59: #{tpu_custom_call.1} parent=43 // pred_region
          %317 = dma.done [#allocation10], 512
        $region60: #{tpu_custom_call.1} parent=43 // pred_fallthru
          _
        // Predicated region
        $region61: #{tpu_custom_call.1} parent=43 // pred_check
          %p318 = pneg %p149
        $region62: #{tpu_custom_call.1} parent=43 // pred_check_branch
          %320 = sbr.rel (%p318) target = $region64
        $region63: #{tpu_custom_call.1} parent=43 // pred_region
          %321 = dma.done [#allocation10], 512
        $region64: #{tpu_custom_call.1} parent=43 // pred_fallthru
          _
        %s322 = sand.u32 %s52, 1
        %s323 = scalar_lea.sflag [#allocation4], %s322
        %s324 = sand.u32 %s52, 1
        %s325 = smul.addr %s324, 8
        %s326 = scalar_lea.vmem [#allocation3], %s325
        %p327 = pneg %p65
        %p328 = pneg %p62
        %p329 = pneg %p86
        %p330 = pneg %p83
        %p331 = pneg %p107
        %p332 = pneg %p104
        %p333 = pneg %p128
        %p334 = pneg %p125
        %p335 = pneg %p149
        %p336 = pneg %p146
        %p337 = pneg %p170
        %p338 = pneg %p167
        %p339 = pneg %p198
        %p340 = pneg %p195
        %s341 = sand.u32 %s185, 1
        %s342 = scalar_lea.sflag [#allocation5], %s341
        %s343 = sand.u32 %s185, 1
        %s344 = smul.addr %s343, 8
        %s345 = scalar_lea.vmem [#allocation12], %s344
        %v346 = vld [vmem:[%s301] sm:$0xff]
        %s347 = smul.u32 %s32, 32
        %s348 = scalar_lea.vmem [#allocation8], %s347
        %v349 = vld [vmem:[%s348] sm:$0xff]
        %v350 = vld [vmem:[%s348 + $0x8] sm:$0xff]
        %v351 = vld [vmem:[%s348 + $0x10] sm:$0xff]
        %v352 = vld [vmem:[%s348 + $0x18] sm:$0xff]
        %vm353 = vcmask 261120
        %v355 = vsel %vm353, %v346, 0
        %357 = vmatprep.subr.mxu0 0.0
        %358 = vmatpush1.msra.mxu0 0.0
        %359 = vmatprep.subr.mxu0 0.0
        %360 = vmatpush1.msra.mxu0 0.0
        %361 = vmatprep.subr.mxu0 0.0
        %362 = vmatpush1.msra.mxu0 0.0
        %363 = vmatprep.subr.mxu0 0.0
        %364 = vmatpush1.msra.mxu0 0.0
        %365 = vmatprep.subr.mxu0 0.0
        %366 = vmatpush1.msra.mxu0 0.0
        %367 = vmatprep.subr.mxu0 0.0
        %368 = vmatpush1.msra.mxu0 0.0
        %369 = vmatprep.subr.mxu0 0.0
        %370 = vmatpush1.msra.mxu0 0.0
        %371 = vmatprep.subr.mxu0 0.0
        %372 = vmatpush1.msra.mxu0 0.0
        %373 = vmatprep.subr.mxu0 0.0
        %374 = vmatpush1.msra.mxu0 0.0
        %375 = vmatprep.subr.mxu0 0.0
        %376 = vmatpush1.msra.mxu0 0.0
        %377 = vmatprep.subr.mxu0 0.0
        %378 = vmatpush1.msra.mxu0 0.0
        %379 = vmatprep.subr.mxu0 0.0
        %380 = vmatpush1.msra.mxu0 0.0
        %381 = vmatprep.subr.mxu0 0.0
        %382 = vmatpush1.msra.mxu0 %v352
        %383 = vmatprep.subr.mxu0 0.0
        %384 = vmatpush1.msra.mxu0 %v351
        %385 = vmatprep.subr.mxu0 0.0
        %386 = vmatpush1.msra.mxu0 %v350
        %387 = vmatprep.subr.mxu0 0.0
        %388 = vmatpush1.msra.mxu0 %v349
        %389 = vmatprep.subr.mxu0 0.0
        %390 = vmatpush2.msra.mxu0 0.0
        %391 = vmatprep.subr.mxu0 0.0
        %392 = vmatpush2.msra.mxu0 0.0
        %393 = vmatprep.subr.mxu0 0.0
        %394 = vmatpush2.msra.mxu0 0.0
        %395 = vmatprep.subr.mxu0 0.0
        %396 = vmatpush2.msra.mxu0 0.0
        %397 = vmatprep.subr.mxu0 0.0
        %398 = vmatpush2.msra.mxu0 0.0
        %399 = vmatprep.subr.mxu0 0.0
        %400 = vmatpush2.msra.mxu0 0.0
        %401 = vmatprep.subr.mxu0 0.0
        %402 = vmatpush2.msra.mxu0 0.0
        %403 = vmatprep.subr.mxu0 0.0
        %404 = vmatpush2.msra.mxu0 0.0
        %405 = vmatprep.subr.mxu0 0.0
        %406 = vmatpush2.msra.mxu0 0.0
        %407 = vmatprep.subr.mxu0 0.0
        %408 = vmatpush2.msra.mxu0 0.0
        %409 = vmatprep.subr.mxu0 0.0
        %410 = vmatpush2.msra.mxu0 0.0
        %411 = vmatprep.subr.mxu0 0.0
        %412 = vmatpush2.msra.mxu0 0.0
        %413 = vmatprep.subr.mxu0 0.0
        %414 = vmatpush2.msra.mxu0 0.0
        %415 = vmatprep.subr.mxu0 0.0
        %416 = vmatpush2.msra.mxu0 0.0
        %417 = vmatprep.subr.mxu0 0.0
        %418 = vmatpush2.msra.mxu0 0.0
        %419 = vmatprep.subr.mxu0 0.0
        %420 = vmatpush2.msra.mxu0 0.0
        %421 = vmatprep.mubr.f32.mxu0 0.0
        %422 = vmatmul.mubr.f32.gmra.mxu0 %v355
        %v423 = vpop.f32.mrf.mxu0
        %v424 = vadd.f32 0.0, %v423
        %v425 = vpop.f32.mrf.mxu0
        %426 = vdwg.mxu0
        %s427 = scalar_lea.vmem [#allocation9], %s347
        %v428 = vld [vmem:[%s427] sm:$0xff]
        %v429 = vld [vmem:[%s427 + $0x8] sm:$0xff]
        %v430 = vld [vmem:[%s427 + $0x10] sm:$0xff]
        %v431 = vld [vmem:[%s427 + $0x18] sm:$0xff]
        %432 = vmatprep.subr.mxu0 0.0
        %433 = vmatpush1.msra.mxu0 0.0
        %434 = vmatprep.subr.mxu0 0.0
        %435 = vmatpush1.msra.mxu0 0.0
        %436 = vmatprep.subr.mxu0 0.0
        %437 = vmatpush1.msra.mxu0 0.0
        %438 = vmatprep.subr.mxu0 0.0
        %439 = vmatpush1.msra.mxu0 0.0
        %440 = vmatprep.subr.mxu0 0.0
        %441 = vmatpush1.msra.mxu0 0.0
        %442 = vmatprep.subr.mxu0 0.0
        %443 = vmatpush1.msra.mxu0 0.0
        %444 = vmatprep.subr.mxu0 0.0
        %445 = vmatpush1.msra.mxu0 0.0
        %446 = vmatprep.subr.mxu0 0.0
        %447 = vmatpush1.msra.mxu0 0.0
        %448 = vmatprep.subr.mxu0 0.0
        %449 = vmatpush1.msra.mxu0 0.0
        %450 = vmatprep.subr.mxu0 0.0
        %451 = vmatpush1.msra.mxu0 0.0
        %452 = vmatprep.subr.mxu0 0.0
        %453 = vmatpush1.msra.mxu0 0.0
        %454 = vmatprep.subr.mxu0 0.0
        %455 = vmatpush1.msra.mxu0 0.0
        %456 = vmatprep.subr.mxu0 0.0
        %457 = vmatpush1.msra.mxu0 %v431
        %458 = vmatprep.subr.mxu0 0.0
        %459 = vmatpush1.msra.mxu0 %v430
        %460 = vmatprep.subr.mxu0 0.0
        %461 = vmatpush1.msra.mxu0 %v429
        %462 = vmatprep.subr.mxu0 0.0
        %463 = vmatpush1.msra.mxu0 %v428
        %464 = vmatprep.subr.mxu0 0.0
        %465 = vmatpush2.msra.mxu0 0.0
        %466 = vmatprep.subr.mxu0 0.0
        %467 = vmatpush2.msra.mxu0 0.0
        %468 = vmatprep.subr.mxu0 0.0
        %469 = vmatpush2.msra.mxu0 0.0
        %470 = vmatprep.subr.mxu0 0.0
        %471 = vmatpush2.msra.mxu0 0.0
        %472 = vmatprep.subr.mxu0 0.0
        %473 = vmatpush2.msra.mxu0 0.0
        %474 = vmatprep.subr.mxu0 0.0
        %475 = vmatpush2.msra.mxu0 0.0
        %476 = vmatprep.subr.mxu0 0.0
        %477 = vmatpush2.msra.mxu0 0.0
        %478 = vmatprep.subr.mxu0 0.0
        %479 = vmatpush2.msra.mxu0 0.0
        %480 = vmatprep.subr.mxu0 0.0
        %481 = vmatpush2.msra.mxu0 0.0
        %482 = vmatprep.subr.mxu0 0.0
        %483 = vmatpush2.msra.mxu0 0.0
        %484 = vmatprep.subr.mxu0 0.0
        %485 = vmatpush2.msra.mxu0 0.0
        %486 = vmatprep.subr.mxu0 0.0
        %487 = vmatpush2.msra.mxu0 0.0
        %488 = vmatprep.subr.mxu0 0.0
        %489 = vmatpush2.msra.mxu0 0.0
        %490 = vmatprep.subr.mxu0 0.0
        %491 = vmatpush2.msra.mxu0 0.0
        %492 = vmatprep.subr.mxu0 0.0
        %493 = vmatpush2.msra.mxu0 0.0
        %494 = vmatprep.subr.mxu0 0.0
        %495 = vmatpush2.msra.mxu0 0.0
        %496 = vmatprep.mubr.f32.mxu0 0.0
        %497 = vmatmul.mubr.f32.gmra.mxu0 %v355
        %v498 = vpop.f32.mrf.mxu0
        %v499 = vadd.f32 0.0, %v498
        %v500 = vpop.f32.mrf.mxu0
        %501 = vdwg.mxu0
        %s502 = scalar_lea.vmem [#allocation6], %s347
        %v503 = vld [vmem:[%s502] sm:$0xff]
        %v504 = vld [vmem:[%s502 + $0x8] sm:$0xff]
        %v505 = vld [vmem:[%s502 + $0x10] sm:$0xff]
        %v506 = vld [vmem:[%s502 + $0x18] sm:$0xff]
        %507 = vmatprep.subr.mxu0 0.0
        %508 = vmatpush1.msra.mxu0 0.0
        %509 = vmatprep.subr.mxu0 0.0
        %510 = vmatpush1.msra.mxu0 0.0
        %511 = vmatprep.subr.mxu0 0.0
        %512 = vmatpush1.msra.mxu0 0.0
        %513 = vmatprep.subr.mxu0 0.0
        %514 = vmatpush1.msra.mxu0 0.0
        %515 = vmatprep.subr.mxu0 0.0
        %516 = vmatpush1.msra.mxu0 0.0
        %517 = vmatprep.subr.mxu0 0.0
        %518 = vmatpush1.msra.mxu0 0.0
        %519 = vmatprep.subr.mxu0 0.0
        %520 = vmatpush1.msra.mxu0 0.0
        %521 = vmatprep.subr.mxu0 0.0
        %522 = vmatpush1.msra.mxu0 0.0
        %523 = vmatprep.subr.mxu0 0.0
        %524 = vmatpush1.msra.mxu0 0.0
        %525 = vmatprep.subr.mxu0 0.0
        %526 = vmatpush1.msra.mxu0 0.0
        %527 = vmatprep.subr.mxu0 0.0
        %528 = vmatpush1.msra.mxu0 0.0
        %529 = vmatprep.subr.mxu0 0.0
        %530 = vmatpush1.msra.mxu0 0.0
        %531 = vmatprep.subr.mxu0 0.0
        %532 = vmatpush1.msra.mxu0 %v506
        %533 = vmatprep.subr.mxu0 0.0
        %534 = vmatpush1.msra.mxu0 %v505
        %535 = vmatprep.subr.mxu0 0.0
        %536 = vmatpush1.msra.mxu0 %v504
        %537 = vmatprep.subr.mxu0 0.0
        %538 = vmatpush1.msra.mxu0 %v503
        %539 = vmatprep.subr.mxu0 0.0
        %540 = vmatpush2.msra.mxu0 0.0
        %541 = vmatprep.subr.mxu0 0.0
        %542 = vmatpush2.msra.mxu0 0.0
        %543 = vmatprep.subr.mxu0 0.0
        %544 = vmatpush2.msra.mxu0 0.0
        %545 = vmatprep.subr.mxu0 0.0
        %546 = vmatpush2.msra.mxu0 0.0
        %547 = vmatprep.subr.mxu0 0.0
        %548 = vmatpush2.msra.mxu0 0.0
        %549 = vmatprep.subr.mxu0 0.0
        %550 = vmatpush2.msra.mxu0 0.0
        %551 = vmatprep.subr.mxu0 0.0
        %552 = vmatpush2.msra.mxu0 0.0
        %553 = vmatprep.subr.mxu0 0.0
        %554 = vmatpush2.msra.mxu0 0.0
        %555 = vmatprep.subr.mxu0 0.0
        %556 = vmatpush2.msra.mxu0 0.0
        %557 = vmatprep.subr.mxu0 0.0
        %558 = vmatpush2.msra.mxu0 0.0
        %559 = vmatprep.subr.mxu0 0.0
        %560 = vmatpush2.msra.mxu0 0.0
        %561 = vmatprep.subr.mxu0 0.0
        %562 = vmatpush2.msra.mxu0 0.0
        %563 = vmatprep.subr.mxu0 0.0
        %564 = vmatpush2.msra.mxu0 0.0
        %565 = vmatprep.subr.mxu0 0.0
        %566 = vmatpush2.msra.mxu0 0.0
        %567 = vmatprep.subr.mxu0 0.0
        %568 = vmatpush2.msra.mxu0 0.0
        %569 = vmatprep.subr.mxu0 0.0
        %570 = vmatpush2.msra.mxu0 0.0
        %571 = vmatprep.mubr.f32.mxu0 0.0
        %572 = vmatmul.mubr.f32.gmra.mxu0 %v355
        %v573 = vpop.f32.mrf.mxu0
        %v574 = vadd.f32 0.0, %v573
        %v575 = vpop.f32.mrf.mxu0
        %576 = vdwg.mxu0
        %v577 = vmul.f32 %v574, 0.5
        %vm578 = vcmask 31744
        %v580 = vsel %vm578, %v577, 0
        %v583 = vsel %vm578, %v424, 0
        %585 = vmatprep.subr.mxu0 0.0
        %586 = vmatpush1.xpose.msra.mxu0 0.0
        %587 = vmatprep.subr.mxu0 0.0
        %588 = vmatpush1.xpose.msra.mxu0 0.0
        %589 = vmatprep.subr.mxu0 0.0
        %590 = vmatpush1.xpose.msra.mxu0 0.0
        %591 = vmatprep.subr.mxu0 0.0
        %592 = vmatpush1.xpose.msra.mxu0 0.0
        %593 = vmatprep.subr.mxu0 0.0
        %594 = vmatpush1.xpose.msra.mxu0 0.0
        %595 = vmatprep.subr.mxu0 0.0
        %596 = vmatpush1.xpose.msra.mxu0 0.0
        %597 = vmatprep.subr.mxu0 0.0
        %598 = vmatpush1.xpose.msra.mxu0 0.0
        %599 = vmatprep.subr.mxu0 0.0
        %600 = vmatpush1.xpose.msra.mxu0 0.0
        %601 = vmatprep.subr.mxu0 0.0
        %602 = vmatpush1.xpose.msra.mxu0 0.0
        %603 = vmatprep.subr.mxu0 0.0
        %604 = vmatpush1.xpose.msra.mxu0 0.0
        %605 = vmatprep.subr.mxu0 0.0
        %606 = vmatpush1.xpose.msra.mxu0 0.0
        %607 = vmatprep.subr.mxu0 0.0
        %608 = vmatpush1.xpose.msra.mxu0 0.0
        %609 = vmatprep.subr.mxu0 0.0
        %610 = vmatpush1.xpose.msra.mxu0 0.0
        %611 = vmatprep.subr.mxu0 0.0
        %612 = vmatpush1.xpose.msra.mxu0 0.0
        %613 = vmatprep.subr.mxu0 0.0
        %614 = vmatpush1.xpose.msra.mxu0 0.0
        %615 = vmatprep.subr.mxu0 0.0
        %616 = vmatpush1.xpose.msra.mxu0 %v583
        %617 = vmatprep.subr.mxu0 0.0
        %618 = vmatpush2.xpose.msra.mxu0 0.0
        %619 = vmatprep.subr.mxu0 0.0
        %620 = vmatpush2.xpose.msra.mxu0 0.0
        %621 = vmatprep.subr.mxu0 0.0
        %622 = vmatpush2.xpose.msra.mxu0 0.0
        %623 = vmatprep.subr.mxu0 0.0
        %624 = vmatpush2.xpose.msra.mxu0 0.0
        %625 = vmatprep.subr.mxu0 0.0
        %626 = vmatpush2.xpose.msra.mxu0 0.0
        %627 = vmatprep.subr.mxu0 0.0
        %628 = vmatpush2.xpose.msra.mxu0 0.0
        %629 = vmatprep.subr.mxu0 0.0
        %630 = vmatpush2.xpose.msra.mxu0 0.0
        %631 = vmatprep.subr.mxu0 0.0
        %632 = vmatpush2.xpose.msra.mxu0 0.0
        %633 = vmatprep.subr.mxu0 0.0
        %634 = vmatpush2.xpose.msra.mxu0 0.0
        %635 = vmatprep.subr.mxu0 0.0
        %636 = vmatpush2.xpose.msra.mxu0 0.0
        %637 = vmatprep.subr.mxu0 0.0
        %638 = vmatpush2.xpose.msra.mxu0 0.0
        %639 = vmatprep.subr.mxu0 0.0
        %640 = vmatpush2.xpose.msra.mxu0 0.0
        %641 = vmatprep.subr.mxu0 0.0
        %642 = vmatpush2.xpose.msra.mxu0 0.0
        %643 = vmatprep.subr.mxu0 0.0
        %644 = vmatpush2.xpose.msra.mxu0 0.0
        %645 = vmatprep.subr.mxu0 0.0
        %646 = vmatpush2.xpose.msra.mxu0 0.0
        %647 = vmatprep.subr.mxu0 0.0
        %648 = vmatpush2.xpose.msra.mxu0 0.0
        %649 = vmatprep.mubr.f32.mxu0 0.0
        %650 = vmatmul.mubr.f32.gmra.mxu0 %v580
        %v651 = vpop.f32.mrf.mxu0
        %v652 = vadd.f32 0.0, %v651
        %v653 = vpop.f32.mrf.mxu0
        %654 = vdwg.mxu0
        %vm655 = vcmask 64512
        %v656 = vsel %vm655, %v652, -inf
        %657 = vmax.xlane.f32.xlu0 %v656
        %v658 = vpop.xlane.xlu0 %657
        %v659 = vsub.f32 %v652, %v658
        %v660 = vmul.f32 %v659, 1.442695
        %v661 = vpow.pop %v660
        %v662 = vsel %vm655, %v661, 0.0
        %663 = vadd.xlane.f32.xlu0 %v662
        %v664 = vpop.xlane.xlu0 %663
        %v666 = vsel %vm655, %v661, 0
        %668 = vmatprep.subr.mxu0 0.0
        %669 = vmatpush1.msra.mxu0 0.0
        %670 = vmatprep.subr.mxu0 0.0
        %671 = vmatpush1.msra.mxu0 0.0
        %672 = vmatprep.subr.mxu0 0.0
        %673 = vmatpush1.msra.mxu0 0.0
        %674 = vmatprep.subr.mxu0 0.0
        %675 = vmatpush1.msra.mxu0 0.0
        %676 = vmatprep.subr.mxu0 0.0
        %677 = vmatpush1.msra.mxu0 0.0
        %678 = vmatprep.subr.mxu0 0.0
        %679 = vmatpush1.msra.mxu0 0.0
        %680 = vmatprep.subr.mxu0 0.0
        %681 = vmatpush1.msra.mxu0 0.0
        %682 = vmatprep.subr.mxu0 0.0
        %683 = vmatpush1.msra.mxu0 0.0
        %684 = vmatprep.subr.mxu0 0.0
        %685 = vmatpush1.msra.mxu0 0.0
        %686 = vmatprep.subr.mxu0 0.0
        %687 = vmatpush1.msra.mxu0 0.0
        %688 = vmatprep.subr.mxu0 0.0
        %689 = vmatpush1.msra.mxu0 0.0
        %690 = vmatprep.subr.mxu0 0.0
        %691 = vmatpush1.msra.mxu0 0.0
        %692 = vmatprep.subr.mxu0 0.0
        %693 = vmatpush1.msra.mxu0 0.0
        %694 = vmatprep.subr.mxu0 0.0
        %695 = vmatpush1.msra.mxu0 0.0
        %696 = vmatprep.subr.mxu0 0.0
        %697 = vmatpush1.msra.mxu0 0.0
        %698 = vmatprep.subr.mxu0 0.0
        %699 = vmatpush1.msra.mxu0 %v499
        %700 = vmatprep.subr.mxu0 0.0
        %701 = vmatpush2.msra.mxu0 0.0
        %702 = vmatprep.subr.mxu0 0.0
        %703 = vmatpush2.msra.mxu0 0.0
        %704 = vmatprep.subr.mxu0 0.0
        %705 = vmatpush2.msra.mxu0 0.0
        %706 = vmatprep.subr.mxu0 0.0
        %707 = vmatpush2.msra.mxu0 0.0
        %708 = vmatprep.subr.mxu0 0.0
        %709 = vmatpush2.msra.mxu0 0.0
        %710 = vmatprep.subr.mxu0 0.0
        %711 = vmatpush2.msra.mxu0 0.0
        %712 = vmatprep.subr.mxu0 0.0
        %713 = vmatpush2.msra.mxu0 0.0
        %714 = vmatprep.subr.mxu0 0.0
        %715 = vmatpush2.msra.mxu0 0.0
        %716 = vmatprep.subr.mxu0 0.0
        %717 = vmatpush2.msra.mxu0 0.0
        %718 = vmatprep.subr.mxu0 0.0
        %719 = vmatpush2.msra.mxu0 0.0
        %720 = vmatprep.subr.mxu0 0.0
        %721 = vmatpush2.msra.mxu0 0.0
        %722 = vmatprep.subr.mxu0 0.0
        %723 = vmatpush2.msra.mxu0 0.0
        %724 = vmatprep.subr.mxu0 0.0
        %725 = vmatpush2.msra.mxu0 0.0
        %726 = vmatprep.subr.mxu0 0.0
        %727 = vmatpush2.msra.mxu0 0.0
        %728 = vmatprep.subr.mxu0 0.0
        %729 = vmatpush2.msra.mxu0 0.0
        %730 = vmatprep.subr.mxu0 0.0
        %731 = vmatpush2.msra.mxu0 0.0
        %732 = vmatprep.mubr.f32.mxu0 0.0
        %733 = vmatmul.mubr.f32.gmra.mxu0 %v666
        %v734 = vpop.f32.mrf.mxu0
        %v735 = vadd.f32 0.0, %v734
        %v736 = vpop.f32.mrf.mxu0
        %737 = vdwg.mxu0
        %v738 = vrcp.pop %v664
        %v739 = vmul.f32 %v735, %v738
        %740 = vrot.lane.b32.xlu0 %v577, 124
        %v741 = vpop.permute.xlu0 %740
        %742 = vrot.lane.b32.xlu0 %v424, 124
        %v743 = vpop.permute.xlu0 %742
        %v744 = vsel %vm578, %v741, 0
        %v746 = vsel %vm578, %v743, 0
        %748 = vmatprep.subr.mxu0 0.0
        %749 = vmatpush1.xpose.msra.mxu0 0.0
        %750 = vmatprep.subr.mxu0 0.0
        %751 = vmatpush1.xpose.msra.mxu0 0.0
        %752 = vmatprep.subr.mxu0 0.0
        %753 = vmatpush1.xpose.msra.mxu0 0.0
        %754 = vmatprep.subr.mxu0 0.0
        %755 = vmatpush1.xpose.msra.mxu0 0.0
        %756 = vmatprep.subr.mxu0 0.0
        %757 = vmatpush1.xpose.msra.mxu0 0.0
        %758 = vmatprep.subr.mxu0 0.0
        %759 = vmatpush1.xpose.msra.mxu0 0.0
        %760 = vmatprep.subr.mxu0 0.0
        %761 = vmatpush1.xpose.msra.mxu0 0.0
        %762 = vmatprep.subr.mxu0 0.0
        %763 = vmatpush1.xpose.msra.mxu0 0.0
        %764 = vmatprep.subr.mxu0 0.0
        %765 = vmatpush1.xpose.msra.mxu0 0.0
        %766 = vmatprep.subr.mxu0 0.0
        %767 = vmatpush1.xpose.msra.mxu0 0.0
        %768 = vmatprep.subr.mxu0 0.0
        %769 = vmatpush1.xpose.msra.mxu0 0.0
        %770 = vmatprep.subr.mxu0 0.0
        %771 = vmatpush1.xpose.msra.mxu0 0.0
        %772 = vmatprep.subr.mxu0 0.0
        %773 = vmatpush1.xpose.msra.mxu0 0.0
        %774 = vmatprep.subr.mxu0 0.0
        %775 = vmatpush1.xpose.msra.mxu0 0.0
        %776 = vmatprep.subr.mxu0 0.0
        %777 = vmatpush1.xpose.msra.mxu0 0.0
        %778 = vmatprep.subr.mxu0 0.0
        %779 = vmatpush1.xpose.msra.mxu0 %v746
        %780 = vmatprep.subr.mxu0 0.0
        %781 = vmatpush2.xpose.msra.mxu0 0.0
        %782 = vmatprep.subr.mxu0 0.0
        %783 = vmatpush2.xpose.msra.mxu0 0.0
        %784 = vmatprep.subr.mxu0 0.0
        %785 = vmatpush2.xpose.msra.mxu0 0.0
        %786 = vmatprep.subr.mxu0 0.0
        %787 = vmatpush2.xpose.msra.mxu0 0.0
        %788 = vmatprep.subr.mxu0 0.0
        %789 = vmatpush2.xpose.msra.mxu0 0.0
        %790 = vmatprep.subr.mxu0 0.0
        %791 = vmatpush2.xpose.msra.mxu0 0.0
        %792 = vmatprep.subr.mxu0 0.0
        %793 = vmatpush2.xpose.msra.mxu0 0.0
        %794 = vmatprep.subr.mxu0 0.0
        %795 = vmatpush2.xpose.msra.mxu0 0.0
        %796 = vmatprep.subr.mxu0 0.0
        %797 = vmatpush2.xpose.msra.mxu0 0.0
        %798 = vmatprep.subr.mxu0 0.0
        %799 = vmatpush2.xpose.msra.mxu0 0.0
        %800 = vmatprep.subr.mxu0 0.0
        %801 = vmatpush2.xpose.msra.mxu0 0.0
        %802 = vmatprep.subr.mxu0 0.0
        %803 = vmatpush2.xpose.msra.mxu0 0.0
        %804 = vmatprep.subr.mxu0 0.0
        %805 = vmatpush2.xpose.msra.mxu0 0.0
        %806 = vmatprep.subr.mxu0 0.0
        %807 = vmatpush2.xpose.msra.mxu0 0.0
        %808 = vmatprep.subr.mxu0 0.0
        %809 = vmatpush2.xpose.msra.mxu0 0.0
        %810 = vmatprep.subr.mxu0 0.0
        %811 = vmatpush2.xpose.msra.mxu0 0.0
        %812 = vmatprep.mubr.f32.mxu0 0.0
        %813 = vmatmul.mubr.f32.gmra.mxu0 %v744
        %v814 = vpop.f32.mrf.mxu0
        %v815 = vadd.f32 0.0, %v814
        %v816 = vpop.f32.mrf.mxu0
        %817 = vdwg.mxu0
        %v818 = vsel %vm655, %v815, -inf
        %819 = vmax.xlane.f32.xlu0 %v818
        %v820 = vpop.xlane.xlu0 %819
        %v821 = vsub.f32 %v815, %v820
        %v822 = vmul.f32 %v821, 1.442695
        %v823 = vpow.pop %v822
        %v824 = vsel %vm655, %v823, 0.0
        %825 = vadd.xlane.f32.xlu0 %v824
        %v826 = vpop.xlane.xlu0 %825
        %828 = vrot.lane.b32.xlu0 %v499, 124
        %v829 = vpop.permute.xlu0 %828
        %v832 = vsel %vm655, %v823, 0
        %834 = vmatprep.subr.mxu0 0.0
        %835 = vmatpush1.msra.mxu0 0.0
        %836 = vmatprep.subr.mxu0 0.0
        %837 = vmatpush1.msra.mxu0 0.0
        %838 = vmatprep.subr.mxu0 0.0
        %839 = vmatpush1.msra.mxu0 0.0
        %840 = vmatprep.subr.mxu0 0.0
        %841 = vmatpush1.msra.mxu0 0.0
        %842 = vmatprep.subr.mxu0 0.0
        %843 = vmatpush1.msra.mxu0 0.0
        %844 = vmatprep.subr.mxu0 0.0
        %845 = vmatpush1.msra.mxu0 0.0
        %846 = vmatprep.subr.mxu0 0.0
        %847 = vmatpush1.msra.mxu0 0.0
        %848 = vmatprep.subr.mxu0 0.0
        %849 = vmatpush1.msra.mxu0 0.0
        %850 = vmatprep.subr.mxu0 0.0
        %851 = vmatpush1.msra.mxu0 0.0
        %852 = vmatprep.subr.mxu0 0.0
        %853 = vmatpush1.msra.mxu0 0.0
        %854 = vmatprep.subr.mxu0 0.0
        %855 = vmatpush1.msra.mxu0 0.0
        %856 = vmatprep.subr.mxu0 0.0
        %857 = vmatpush1.msra.mxu0 0.0
        %858 = vmatprep.subr.mxu0 0.0
        %859 = vmatpush1.msra.mxu0 0.0
        %860 = vmatprep.subr.mxu0 0.0
        %861 = vmatpush1.msra.mxu0 0.0
        %862 = vmatprep.subr.mxu0 0.0
        %863 = vmatpush1.msra.mxu0 0.0
        %864 = vmatprep.subr.mxu0 0.0
        %865 = vmatpush1.msra.mxu0 %v829
        %866 = vmatprep.subr.mxu0 0.0
        %867 = vmatpush2.msra.mxu0 0.0
        %868 = vmatprep.subr.mxu0 0.0
        %869 = vmatpush2.msra.mxu0 0.0
        %870 = vmatprep.subr.mxu0 0.0
        %871 = vmatpush2.msra.mxu0 0.0
        %872 = vmatprep.subr.mxu0 0.0
        %873 = vmatpush2.msra.mxu0 0.0
        %874 = vmatprep.subr.mxu0 0.0
        %875 = vmatpush2.msra.mxu0 0.0
        %876 = vmatprep.subr.mxu0 0.0
        %877 = vmatpush2.msra.mxu0 0.0
        %878 = vmatprep.subr.mxu0 0.0
        %879 = vmatpush2.msra.mxu0 0.0
        %880 = vmatprep.subr.mxu0 0.0
        %881 = vmatpush2.msra.mxu0 0.0
        %882 = vmatprep.subr.mxu0 0.0
        %883 = vmatpush2.msra.mxu0 0.0
        %884 = vmatprep.subr.mxu0 0.0
        %885 = vmatpush2.msra.mxu0 0.0
        %886 = vmatprep.subr.mxu0 0.0
        %887 = vmatpush2.msra.mxu0 0.0
        %888 = vmatprep.subr.mxu0 0.0
        %889 = vmatpush2.msra.mxu0 0.0
        %890 = vmatprep.subr.mxu0 0.0
        %891 = vmatpush2.msra.mxu0 0.0
        %892 = vmatprep.subr.mxu0 0.0
        %893 = vmatpush2.msra.mxu0 0.0
        %894 = vmatprep.subr.mxu0 0.0
        %895 = vmatpush2.msra.mxu0 0.0
        %896 = vmatprep.subr.mxu0 0.0
        %897 = vmatpush2.msra.mxu0 0.0
        %898 = vmatprep.mubr.f32.mxu0 0.0
        %899 = vmatmul.mubr.f32.gmra.mxu0 %v832
        %v900 = vpop.f32.mrf.mxu0
        %v901 = vadd.f32 0.0, %v900
        %v902 = vpop.f32.mrf.mxu0
        %903 = vdwg.mxu0
        %v904 = vrcp.pop %v826
        %v905 = vmul.f32 %v901, %v904
        %906 = vrot.lane.b32.xlu0 %v577, 120
        %v907 = vpop.permute.xlu0 %906
        %908 = vrot.lane.b32.xlu0 %v424, 120
        %v909 = vpop.permute.xlu0 %908
        %v910 = vsel %vm578, %v907, 0
        %v912 = vsel %vm578, %v909, 0
        %914 = vmatprep.subr.mxu0 0.0
        %915 = vmatpush1.xpose.msra.mxu0 0.0
        %916 = vmatprep.subr.mxu0 0.0
        %917 = vmatpush1.xpose.msra.mxu0 0.0
        %918 = vmatprep.subr.mxu0 0.0
        %919 = vmatpush1.xpose.msra.mxu0 0.0
        %920 = vmatprep.subr.mxu0 0.0
        %921 = vmatpush1.xpose.msra.mxu0 0.0
        %922 = vmatprep.subr.mxu0 0.0
        %923 = vmatpush1.xpose.msra.mxu0 0.0
        %924 = vmatprep.subr.mxu0 0.0
        %925 = vmatpush1.xpose.msra.mxu0 0.0
        %926 = vmatprep.subr.mxu0 0.0
        %927 = vmatpush1.xpose.msra.mxu0 0.0
        %928 = vmatprep.subr.mxu0 0.0
        %929 = vmatpush1.xpose.msra.mxu0 0.0
        %930 = vmatprep.subr.mxu0 0.0
        %931 = vmatpush1.xpose.msra.mxu0 0.0
        %932 = vmatprep.subr.mxu0 0.0
        %933 = vmatpush1.xpose.msra.mxu0 0.0
        %934 = vmatprep.subr.mxu0 0.0
        %935 = vmatpush1.xpose.msra.mxu0 0.0
        %936 = vmatprep.subr.mxu0 0.0
        %937 = vmatpush1.xpose.msra.mxu0 0.0
        %938 = vmatprep.subr.mxu0 0.0
        %939 = vmatpush1.xpose.msra.mxu0 0.0
        %940 = vmatprep.subr.mxu0 0.0
        %941 = vmatpush1.xpose.msra.mxu0 0.0
        %942 = vmatprep.subr.mxu0 0.0
        %943 = vmatpush1.xpose.msra.mxu0 0.0
        %944 = vmatprep.subr.mxu0 0.0
        %945 = vmatpush1.xpose.msra.mxu0 %v912
        %946 = vmatprep.subr.mxu0 0.0
        %947 = vmatpush2.xpose.msra.mxu0 0.0
        %948 = vmatprep.subr.mxu0 0.0
        %949 = vmatpush2.xpose.msra.mxu0 0.0
        %950 = vmatprep.subr.mxu0 0.0
        %951 = vmatpush2.xpose.msra.mxu0 0.0
        %952 = vmatprep.subr.mxu0 0.0
        %953 = vmatpush2.xpose.msra.mxu0 0.0
        %954 = vmatprep.subr.mxu0 0.0
        %955 = vmatpush2.xpose.msra.mxu0 0.0
        %956 = vmatprep.subr.mxu0 0.0
        %957 = vmatpush2.xpose.msra.mxu0 0.0
        %958 = vmatprep.subr.mxu0 0.0
        %959 = vmatpush2.xpose.msra.mxu0 0.0
        %960 = vmatprep.subr.mxu0 0.0
        %961 = vmatpush2.xpose.msra.mxu0 0.0
        %962 = vmatprep.subr.mxu0 0.0
        %963 = vmatpush2.xpose.msra.mxu0 0.0
        %964 = vmatprep.subr.mxu0 0.0
        %965 = vmatpush2.xpose.msra.mxu0 0.0
        %966 = vmatprep.subr.mxu0 0.0
        %967 = vmatpush2.xpose.msra.mxu0 0.0
        %968 = vmatprep.subr.mxu0 0.0
        %969 = vmatpush2.xpose.msra.mxu0 0.0
        %970 = vmatprep.subr.mxu0 0.0
        %971 = vmatpush2.xpose.msra.mxu0 0.0
        %972 = vmatprep.subr.mxu0 0.0
        %973 = vmatpush2.xpose.msra.mxu0 0.0
        %974 = vmatprep.subr.mxu0 0.0
        %975 = vmatpush2.xpose.msra.mxu0 0.0
        %976 = vmatprep.subr.mxu0 0.0
        %977 = vmatpush2.xpose.msra.mxu0 0.0
        %978 = vmatprep.mubr.f32.mxu0 0.0
        %979 = vmatmul.mubr.f32.gmra.mxu0 %v910
        %v980 = vpop.f32.mrf.mxu0
        %v981 = vadd.f32 0.0, %v980
        %v982 = vpop.f32.mrf.mxu0
        %983 = vdwg.mxu0
        %v984 = vsel %vm655, %v981, -inf
        %985 = vmax.xlane.f32.xlu0 %v984
        %v986 = vpop.xlane.xlu0 %985
        %v987 = vsub.f32 %v981, %v986
        %v988 = vmul.f32 %v987, 1.442695
        %v989 = vpow.pop %v988
        %v990 = vsel %vm655, %v989, 0.0
        %991 = vadd.xlane.f32.xlu0 %v990
        %v992 = vpop.xlane.xlu0 %991
        %993 = vrot.lane.b32.xlu0 %v499, 120
        %v994 = vpop.permute.xlu0 %993
        %v997 = vsel %vm655, %v989, 0
        %999 = vmatprep.subr.mxu0 0.0
        %1000 = vmatpush1.msra.mxu0 0.0
        %1001 = vmatprep.subr.mxu0 0.0
        %1002 = vmatpush1.msra.mxu0 0.0
        %1003 = vmatprep.subr.mxu0 0.0
        %1004 = vmatpush1.msra.mxu0 0.0
        %1005 = vmatprep.subr.mxu0 0.0
        %1006 = vmatpush1.msra.mxu0 0.0
        %1007 = vmatprep.subr.mxu0 0.0
        %1008 = vmatpush1.msra.mxu0 0.0
        %1009 = vmatprep.subr.mxu0 0.0
        %1010 = vmatpush1.msra.mxu0 0.0
        %1011 = vmatprep.subr.mxu0 0.0
        %1012 = vmatpush1.msra.mxu0 0.0
        %1013 = vmatprep.subr.mxu0 0.0
        %1014 = vmatpush1.msra.mxu0 0.0
        %1015 = vmatprep.subr.mxu0 0.0
        %1016 = vmatpush1.msra.mxu0 0.0
        %1017 = vmatprep.subr.mxu0 0.0
        %1018 = vmatpush1.msra.mxu0 0.0
        %1019 = vmatprep.subr.mxu0 0.0
        %1020 = vmatpush1.msra.mxu0 0.0
        %1021 = vmatprep.subr.mxu0 0.0
        %1022 = vmatpush1.msra.mxu0 0.0
        %1023 = vmatprep.subr.mxu0 0.0
        %1024 = vmatpush1.msra.mxu0 0.0
        %1025 = vmatprep.subr.mxu0 0.0
        %1026 = vmatpush1.msra.mxu0 0.0
        %1027 = vmatprep.subr.mxu0 0.0
        %1028 = vmatpush1.msra.mxu0 0.0
        %1029 = vmatprep.subr.mxu0 0.0
        %1030 = vmatpush1.msra.mxu0 %v994
        %1031 = vmatprep.subr.mxu0 0.0
        %1032 = vmatpush2.msra.mxu0 0.0
        %1033 = vmatprep.subr.mxu0 0.0
        %1034 = vmatpush2.msra.mxu0 0.0
        %1035 = vmatprep.subr.mxu0 0.0
        %1036 = vmatpush2.msra.mxu0 0.0
        %1037 = vmatprep.subr.mxu0 0.0
        %1038 = vmatpush2.msra.mxu0 0.0
        %1039 = vmatprep.subr.mxu0 0.0
        %1040 = vmatpush2.msra.mxu0 0.0
        %1041 = vmatprep.subr.mxu0 0.0
        %1042 = vmatpush2.msra.mxu0 0.0
        %1043 = vmatprep.subr.mxu0 0.0
        %1044 = vmatpush2.msra.mxu0 0.0
        %1045 = vmatprep.subr.mxu0 0.0
        %1046 = vmatpush2.msra.mxu0 0.0
        %1047 = vmatprep.subr.mxu0 0.0
        %1048 = vmatpush2.msra.mxu0 0.0
        %1049 = vmatprep.subr.mxu0 0.0
        %1050 = vmatpush2.msra.mxu0 0.0
        %1051 = vmatprep.subr.mxu0 0.0
        %1052 = vmatpush2.msra.mxu0 0.0
        %1053 = vmatprep.subr.mxu0 0.0
        %1054 = vmatpush2.msra.mxu0 0.0
        %1055 = vmatprep.subr.mxu0 0.0
        %1056 = vmatpush2.msra.mxu0 0.0
        %1057 = vmatprep.subr.mxu0 0.0
        %1058 = vmatpush2.msra.mxu0 0.0
        %1059 = vmatprep.subr.mxu0 0.0
        %1060 = vmatpush2.msra.mxu0 0.0
        %1061 = vmatprep.subr.mxu0 0.0
        %1062 = vmatpush2.msra.mxu0 0.0
        %1063 = vmatprep.mubr.f32.mxu0 0.0
        %1064 = vmatmul.mubr.f32.gmra.mxu0 %v997
        %v1065 = vpop.f32.mrf.mxu0
        %v1066 = vadd.f32 0.0, %v1065
        %v1067 = vpop.f32.mrf.mxu0
        %1068 = vdwg.mxu0
        %v1069 = vrcp.pop %v992
        %v1070 = vmul.f32 %v1066, %v1069
        %1071 = vrot.lane.b32.xlu0 %v577, 116
        %v1072 = vpop.permute.xlu0 %1071
        %1073 = vrot.lane.b32.xlu0 %v424, 116
        %v1074 = vpop.permute.xlu0 %1073
        %v1075 = vsel %vm578, %v1072, 0
        %v1077 = vsel %vm578, %v1074, 0
        %1079 = vmatprep.subr.mxu0 0.0
        %1080 = vmatpush1.xpose.msra.mxu0 0.0
        %1081 = vmatprep.subr.mxu0 0.0
        %1082 = vmatpush1.xpose.msra.mxu0 0.0
        %1083 = vmatprep.subr.mxu0 0.0
        %1084 = vmatpush1.xpose.msra.mxu0 0.0
        %1085 = vmatprep.subr.mxu0 0.0
        %1086 = vmatpush1.xpose.msra.mxu0 0.0
        %1087 = vmatprep.subr.mxu0 0.0
        %1088 = vmatpush1.xpose.msra.mxu0 0.0
        %1089 = vmatprep.subr.mxu0 0.0
        %1090 = vmatpush1.xpose.msra.mxu0 0.0
        %1091 = vmatprep.subr.mxu0 0.0
        %1092 = vmatpush1.xpose.msra.mxu0 0.0
        %1093 = vmatprep.subr.mxu0 0.0
        %1094 = vmatpush1.xpose.msra.mxu0 0.0
        %1095 = vmatprep.subr.mxu0 0.0
        %1096 = vmatpush1.xpose.msra.mxu0 0.0
        %1097 = vmatprep.subr.mxu0 0.0
        %1098 = vmatpush1.xpose.msra.mxu0 0.0
        %1099 = vmatprep.subr.mxu0 0.0
        %1100 = vmatpush1.xpose.msra.mxu0 0.0
        %1101 = vmatprep.subr.mxu0 0.0
        %1102 = vmatpush1.xpose.msra.mxu0 0.0
        %1103 = vmatprep.subr.mxu0 0.0
        %1104 = vmatpush1.xpose.msra.mxu0 0.0
        %1105 = vmatprep.subr.mxu0 0.0
        %1106 = vmatpush1.xpose.msra.mxu0 0.0
        %1107 = vmatprep.subr.mxu0 0.0
        %1108 = vmatpush1.xpose.msra.mxu0 0.0
        %1109 = vmatprep.subr.mxu0 0.0
        %1110 = vmatpush1.xpose.msra.mxu0 %v1077
        %1111 = vmatprep.subr.mxu0 0.0
        %1112 = vmatpush2.xpose.msra.mxu0 0.0
        %1113 = vmatprep.subr.mxu0 0.0
        %1114 = vmatpush2.xpose.msra.mxu0 0.0
        %1115 = vmatprep.subr.mxu0 0.0
        %1116 = vmatpush2.xpose.msra.mxu0 0.0
        %1117 = vmatprep.subr.mxu0 0.0
        %1118 = vmatpush2.xpose.msra.mxu0 0.0
        %1119 = vmatprep.subr.mxu0 0.0
        %1120 = vmatpush2.xpose.msra.mxu0 0.0
        %1121 = vmatprep.subr.mxu0 0.0
        %1122 = vmatpush2.xpose.msra.mxu0 0.0
        %1123 = vmatprep.subr.mxu0 0.0
        %1124 = vmatpush2.xpose.msra.mxu0 0.0
        %1125 = vmatprep.subr.mxu0 0.0
        %1126 = vmatpush2.xpose.msra.mxu0 0.0
        %1127 = vmatprep.subr.mxu0 0.0
        %1128 = vmatpush2.xpose.msra.mxu0 0.0
        %1129 = vmatprep.subr.mxu0 0.0
        %1130 = vmatpush2.xpose.msra.mxu0 0.0
        %1131 = vmatprep.subr.mxu0 0.0
        %1132 = vmatpush2.xpose.msra.mxu0 0.0
        %1133 = vmatprep.subr.mxu0 0.0
        %1134 = vmatpush2.xpose.msra.mxu0 0.0
        %1135 = vmatprep.subr.mxu0 0.0
        %1136 = vmatpush2.xpose.msra.mxu0 0.0
        %1137 = vmatprep.subr.mxu0 0.0
        %1138 = vmatpush2.xpose.msra.mxu0 0.0
        %1139 = vmatprep.subr.mxu0 0.0
        %1140 = vmatpush2.xpose.msra.mxu0 0.0
        %1141 = vmatprep.subr.mxu0 0.0
        %1142 = vmatpush2.xpose.msra.mxu0 0.0
        %1143 = vmatprep.mubr.f32.mxu0 0.0
        %1144 = vmatmul.mubr.f32.gmra.mxu0 %v1075
        %v1145 = vpop.f32.mrf.mxu0
        %v1146 = vadd.f32 0.0, %v1145
        %v1147 = vpop.f32.mrf.mxu0
        %1148 = vdwg.mxu0
        %v1149 = vsel %vm655, %v1146, -inf
        %1150 = vmax.xlane.f32.xlu0 %v1149
        %v1151 = vpop.xlane.xlu0 %1150
        %v1152 = vsub.f32 %v1146, %v1151
        %v1153 = vmul.f32 %v1152, 1.442695
        %v1154 = vpow.pop %v1153
        %v1155 = vsel %vm655, %v1154, 0.0
        %1156 = vadd.xlane.f32.xlu0 %v1155
        %v1157 = vpop.xlane.xlu0 %1156
        %1158 = vrot.lane.b32.xlu0 %v499, 116
        %v1159 = vpop.permute.xlu0 %1158
        %v1162 = vsel %vm655, %v1154, 0
        %1164 = vmatprep.subr.mxu0 0.0
        %1165 = vmatpush1.msra.mxu0 0.0
        %1166 = vmatprep.subr.mxu0 0.0
        %1167 = vmatpush1.msra.mxu0 0.0
        %1168 = vmatprep.subr.mxu0 0.0
        %1169 = vmatpush1.msra.mxu0 0.0
        %1170 = vmatprep.subr.mxu0 0.0
        %1171 = vmatpush1.msra.mxu0 0.0
        %1172 = vmatprep.subr.mxu0 0.0
        %1173 = vmatpush1.msra.mxu0 0.0
        %1174 = vmatprep.subr.mxu0 0.0
        %1175 = vmatpush1.msra.mxu0 0.0
        %1176 = vmatprep.subr.mxu0 0.0
        %1177 = vmatpush1.msra.mxu0 0.0
        %1178 = vmatprep.subr.mxu0 0.0
        %1179 = vmatpush1.msra.mxu0 0.0
        %1180 = vmatprep.subr.mxu0 0.0
        %1181 = vmatpush1.msra.mxu0 0.0
        %1182 = vmatprep.subr.mxu0 0.0
        %1183 = vmatpush1.msra.mxu0 0.0
        %1184 = vmatprep.subr.mxu0 0.0
        %1185 = vmatpush1.msra.mxu0 0.0
        %1186 = vmatprep.subr.mxu0 0.0
        %1187 = vmatpush1.msra.mxu0 0.0
        %1188 = vmatprep.subr.mxu0 0.0
        %1189 = vmatpush1.msra.mxu0 0.0
        %1190 = vmatprep.subr.mxu0 0.0
        %1191 = vmatpush1.msra.mxu0 0.0
        %1192 = vmatprep.subr.mxu0 0.0
        %1193 = vmatpush1.msra.mxu0 0.0
        %1194 = vmatprep.subr.mxu0 0.0
        %1195 = vmatpush1.msra.mxu0 %v1159
        %1196 = vmatprep.subr.mxu0 0.0
        %1197 = vmatpush2.msra.mxu0 0.0
        %1198 = vmatprep.subr.mxu0 0.0
        %1199 = vmatpush2.msra.mxu0 0.0
        %1200 = vmatprep.subr.mxu0 0.0
        %1201 = vmatpush2.msra.mxu0 0.0
        %1202 = vmatprep.subr.mxu0 0.0
        %1203 = vmatpush2.msra.mxu0 0.0
        %1204 = vmatprep.subr.mxu0 0.0
        %1205 = vmatpush2.msra.mxu0 0.0
        %1206 = vmatprep.subr.mxu0 0.0
        %1207 = vmatpush2.msra.mxu0 0.0
        %1208 = vmatprep.subr.mxu0 0.0
        %1209 = vmatpush2.msra.mxu0 0.0
        %1210 = vmatprep.subr.mxu0 0.0
        %1211 = vmatpush2.msra.mxu0 0.0
        %1212 = vmatprep.subr.mxu0 0.0
        %1213 = vmatpush2.msra.mxu0 0.0
        %1214 = vmatprep.subr.mxu0 0.0
        %1215 = vmatpush2.msra.mxu0 0.0
        %1216 = vmatprep.subr.mxu0 0.0
        %1217 = vmatpush2.msra.mxu0 0.0
        %1218 = vmatprep.subr.mxu0 0.0
        %1219 = vmatpush2.msra.mxu0 0.0
        %1220 = vmatprep.subr.mxu0 0.0
        %1221 = vmatpush2.msra.mxu0 0.0
        %1222 = vmatprep.subr.mxu0 0.0
        %1223 = vmatpush2.msra.mxu0 0.0
        %1224 = vmatprep.subr.mxu0 0.0
        %1225 = vmatpush2.msra.mxu0 0.0
        %1226 = vmatprep.subr.mxu0 0.0
        %1227 = vmatpush2.msra.mxu0 0.0
        %1228 = vmatprep.mubr.f32.mxu0 0.0
        %1229 = vmatmul.mubr.f32.gmra.mxu0 %v1162
        %v1230 = vpop.f32.mrf.mxu0
        %v1231 = vadd.f32 0.0, %v1230
        %v1232 = vpop.f32.mrf.mxu0
        %1233 = vdwg.mxu0
        %v1234 = vrcp.pop %v1157
        %v1235 = vmul.f32 %v1231, %v1234
        %1236 = vrot.lane.b32.xlu0 %v577, 112
        %v1237 = vpop.permute.xlu0 %1236
        %1238 = vrot.lane.b32.xlu0 %v424, 112
        %v1239 = vpop.permute.xlu0 %1238
        %v1240 = vsel %vm578, %v1237, 0
        %v1242 = vsel %vm578, %v1239, 0
        %1244 = vmatprep.subr.mxu0 0.0
        %1245 = vmatpush1.xpose.msra.mxu0 0.0
        %1246 = vmatprep.subr.mxu0 0.0
        %1247 = vmatpush1.xpose.msra.mxu0 0.0
        %1248 = vmatprep.subr.mxu0 0.0
        %1249 = vmatpush1.xpose.msra.mxu0 0.0
        %1250 = vmatprep.subr.mxu0 0.0
        %1251 = vmatpush1.xpose.msra.mxu0 0.0
        %1252 = vmatprep.subr.mxu0 0.0
        %1253 = vmatpush1.xpose.msra.mxu0 0.0
        %1254 = vmatprep.subr.mxu0 0.0
        %1255 = vmatpush1.xpose.msra.mxu0 0.0
        %1256 = vmatprep.subr.mxu0 0.0
        %1257 = vmatpush1.xpose.msra.mxu0 0.0
        %1258 = vmatprep.subr.mxu0 0.0
        %1259 = vmatpush1.xpose.msra.mxu0 0.0
        %1260 = vmatprep.subr.mxu0 0.0
        %1261 = vmatpush1.xpose.msra.mxu0 0.0
        %1262 = vmatprep.subr.mxu0 0.0
        %1263 = vmatpush1.xpose.msra.mxu0 0.0
        %1264 = vmatprep.subr.mxu0 0.0
        %1265 = vmatpush1.xpose.msra.mxu0 0.0
        %1266 = vmatprep.subr.mxu0 0.0
        %1267 = vmatpush1.xpose.msra.mxu0 0.0
        %1268 = vmatprep.subr.mxu0 0.0
        %1269 = vmatpush1.xpose.msra.mxu0 0.0
        %1270 = vmatprep.subr.mxu0 0.0
        %1271 = vmatpush1.xpose.msra.mxu0 0.0
        %1272 = vmatprep.subr.mxu0 0.0
        %1273 = vmatpush1.xpose.msra.mxu0 0.0
        %1274 = vmatprep.subr.mxu0 0.0
        %1275 = vmatpush1.xpose.msra.mxu0 %v1242
        %1276 = vmatprep.subr.mxu0 0.0
        %1277 = vmatpush2.xpose.msra.mxu0 0.0
        %1278 = vmatprep.subr.mxu0 0.0
        %1279 = vmatpush2.xpose.msra.mxu0 0.0
        %1280 = vmatprep.subr.mxu0 0.0
        %1281 = vmatpush2.xpose.msra.mxu0 0.0
        %1282 = vmatprep.subr.mxu0 0.0
        %1283 = vmatpush2.xpose.msra.mxu0 0.0
        %1284 = vmatprep.subr.mxu0 0.0
        %1285 = vmatpush2.xpose.msra.mxu0 0.0
        %1286 = vmatprep.subr.mxu0 0.0
        %1287 = vmatpush2.xpose.msra.mxu0 0.0
        %1288 = vmatprep.subr.mxu0 0.0
        %1289 = vmatpush2.xpose.msra.mxu0 0.0
        %1290 = vmatprep.subr.mxu0 0.0
        %1291 = vmatpush2.xpose.msra.mxu0 0.0
        %1292 = vmatprep.subr.mxu0 0.0
        %1293 = vmatpush2.xpose.msra.mxu0 0.0
        %1294 = vmatprep.subr.mxu0 0.0
        %1295 = vmatpush2.xpose.msra.mxu0 0.0
        %1296 = vmatprep.subr.mxu0 0.0
        %1297 = vmatpush2.xpose.msra.mxu0 0.0
        %1298 = vmatprep.subr.mxu0 0.0
        %1299 = vmatpush2.xpose.msra.mxu0 0.0
        %1300 = vmatprep.subr.mxu0 0.0
        %1301 = vmatpush2.xpose.msra.mxu0 0.0
        %1302 = vmatprep.subr.mxu0 0.0
        %1303 = vmatpush2.xpose.msra.mxu0 0.0
        %1304 = vmatprep.subr.mxu0 0.0
        %1305 = vmatpush2.xpose.msra.mxu0 0.0
        %1306 = vmatprep.subr.mxu0 0.0
        %1307 = vmatpush2.xpose.msra.mxu0 0.0
        %1308 = vmatprep.mubr.f32.mxu0 0.0
        %1309 = vmatmul.mubr.f32.gmra.mxu0 %v1240
        %v1310 = vpop.f32.mrf.mxu0
        %v1311 = vadd.f32 0.0, %v1310
        %v1312 = vpop.f32.mrf.mxu0
        %1313 = vdwg.mxu0
        %v1314 = vsel %vm655, %v1311, -inf
        %1315 = vmax.xlane.f32.xlu0 %v1314
        %v1316 = vpop.xlane.xlu0 %1315
        %v1317 = vsub.f32 %v1311, %v1316
        %v1318 = vmul.f32 %v1317, 1.442695
        %v1319 = vpow.pop %v1318
        %v1320 = vsel %vm655, %v1319, 0.0
        %1321 = vadd.xlane.f32.xlu0 %v1320
        %v1322 = vpop.xlane.xlu0 %1321
        %1323 = vrot.lane.b32.xlu0 %v499, 112
        %v1324 = vpop.permute.xlu0 %1323
        %v1327 = vsel %vm655, %v1319, 0
        %1329 = vmatprep.subr.mxu0 0.0
        %1330 = vmatpush1.msra.mxu0 0.0
        %1331 = vmatprep.subr.mxu0 0.0
        %1332 = vmatpush1.msra.mxu0 0.0
        %1333 = vmatprep.subr.mxu0 0.0
        %1334 = vmatpush1.msra.mxu0 0.0
        %1335 = vmatprep.subr.mxu0 0.0
        %1336 = vmatpush1.msra.mxu0 0.0
        %1337 = vmatprep.subr.mxu0 0.0
        %1338 = vmatpush1.msra.mxu0 0.0
        %1339 = vmatprep.subr.mxu0 0.0
        %1340 = vmatpush1.msra.mxu0 0.0
        %1341 = vmatprep.subr.mxu0 0.0
        %1342 = vmatpush1.msra.mxu0 0.0
        %1343 = vmatprep.subr.mxu0 0.0
        %1344 = vmatpush1.msra.mxu0 0.0
        %1345 = vmatprep.subr.mxu0 0.0
        %1346 = vmatpush1.msra.mxu0 0.0
        %1347 = vmatprep.subr.mxu0 0.0
        %1348 = vmatpush1.msra.mxu0 0.0
        %1349 = vmatprep.subr.mxu0 0.0
        %1350 = vmatpush1.msra.mxu0 0.0
        %1351 = vmatprep.subr.mxu0 0.0
        %1352 = vmatpush1.msra.mxu0 0.0
        %1353 = vmatprep.subr.mxu0 0.0
        %1354 = vmatpush1.msra.mxu0 0.0
        %1355 = vmatprep.subr.mxu0 0.0
        %1356 = vmatpush1.msra.mxu0 0.0
        %1357 = vmatprep.subr.mxu0 0.0
        %1358 = vmatpush1.msra.mxu0 0.0
        %1359 = vmatprep.subr.mxu0 0.0
        %1360 = vmatpush1.msra.mxu0 %v1324
        %1361 = vmatprep.subr.mxu0 0.0
        %1362 = vmatpush2.msra.mxu0 0.0
        %1363 = vmatprep.subr.mxu0 0.0
        %1364 = vmatpush2.msra.mxu0 0.0
        %1365 = vmatprep.subr.mxu0 0.0
        %1366 = vmatpush2.msra.mxu0 0.0
        %1367 = vmatprep.subr.mxu0 0.0
        %1368 = vmatpush2.msra.mxu0 0.0
        %1369 = vmatprep.subr.mxu0 0.0
        %1370 = vmatpush2.msra.mxu0 0.0
        %1371 = vmatprep.subr.mxu0 0.0
        %1372 = vmatpush2.msra.mxu0 0.0
        %1373 = vmatprep.subr.mxu0 0.0
        %1374 = vmatpush2.msra.mxu0 0.0
        %1375 = vmatprep.subr.mxu0 0.0
        %1376 = vmatpush2.msra.mxu0 0.0
        %1377 = vmatprep.subr.mxu0 0.0
        %1378 = vmatpush2.msra.mxu0 0.0
        %1379 = vmatprep.subr.mxu0 0.0
        %1380 = vmatpush2.msra.mxu0 0.0
        %1381 = vmatprep.subr.mxu0 0.0
        %1382 = vmatpush2.msra.mxu0 0.0
        %1383 = vmatprep.subr.mxu0 0.0
        %1384 = vmatpush2.msra.mxu0 0.0
        %1385 = vmatprep.subr.mxu0 0.0
        %1386 = vmatpush2.msra.mxu0 0.0
        %1387 = vmatprep.subr.mxu0 0.0
        %1388 = vmatpush2.msra.mxu0 0.0
        %1389 = vmatprep.subr.mxu0 0.0
        %1390 = vmatpush2.msra.mxu0 0.0
        %1391 = vmatprep.subr.mxu0 0.0
        %1392 = vmatpush2.msra.mxu0 0.0
        %1393 = vmatprep.mubr.f32.mxu0 0.0
        %1394 = vmatmul.mubr.f32.gmra.mxu0 %v1327
        %v1395 = vpop.f32.mrf.mxu0
        %v1396 = vadd.f32 0.0, %v1395
        %v1397 = vpop.f32.mrf.mxu0
        %1398 = vdwg.mxu0
        %v1399 = vrcp.pop %v1322
        %v1400 = vmul.f32 %v1396, %v1399
        %1401 = vrot.lane.b32.xlu0 %v577, 108
        %v1402 = vpop.permute.xlu0 %1401
        %1403 = vrot.lane.b32.xlu0 %v424, 108
        %v1404 = vpop.permute.xlu0 %1403
        %v1405 = vsel %vm578, %v1402, 0
        %v1407 = vsel %vm578, %v1404, 0
        %1409 = vmatprep.subr.mxu0 0.0
        %1410 = vmatpush1.xpose.msra.mxu0 0.0
        %1411 = vmatprep.subr.mxu0 0.0
        %1412 = vmatpush1.xpose.msra.mxu0 0.0
        %1413 = vmatprep.subr.mxu0 0.0
        %1414 = vmatpush1.xpose.msra.mxu0 0.0
        %1415 = vmatprep.subr.mxu0 0.0
        %1416 = vmatpush1.xpose.msra.mxu0 0.0
        %1417 = vmatprep.subr.mxu0 0.0
        %1418 = vmatpush1.xpose.msra.mxu0 0.0
        %1419 = vmatprep.subr.mxu0 0.0
        %1420 = vmatpush1.xpose.msra.mxu0 0.0
        %1421 = vmatprep.subr.mxu0 0.0
        %1422 = vmatpush1.xpose.msra.mxu0 0.0
        %1423 = vmatprep.subr.mxu0 0.0
        %1424 = vmatpush1.xpose.msra.mxu0 0.0
        %1425 = vmatprep.subr.mxu0 0.0
        %1426 = vmatpush1.xpose.msra.mxu0 0.0
        %1427 = vmatprep.subr.mxu0 0.0
        %1428 = vmatpush1.xpose.msra.mxu0 0.0
        %1429 = vmatprep.subr.mxu0 0.0
        %1430 = vmatpush1.xpose.msra.mxu0 0.0
        %1431 = vmatprep.subr.mxu0 0.0
        %1432 = vmatpush1.xpose.msra.mxu0 0.0
        %1433 = vmatprep.subr.mxu0 0.0
        %1434 = vmatpush1.xpose.msra.mxu0 0.0
        %1435 = vmatprep.subr.mxu0 0.0
        %1436 = vmatpush1.xpose.msra.mxu0 0.0
        %1437 = vmatprep.subr.mxu0 0.0
        %1438 = vmatpush1.xpose.msra.mxu0 0.0
        %1439 = vmatprep.subr.mxu0 0.0
        %1440 = vmatpush1.xpose.msra.mxu0 %v1407
        %1441 = vmatprep.subr.mxu0 0.0
        %1442 = vmatpush2.xpose.msra.mxu0 0.0
        %1443 = vmatprep.subr.mxu0 0.0
        %1444 = vmatpush2.xpose.msra.mxu0 0.0
        %1445 = vmatprep.subr.mxu0 0.0
        %1446 = vmatpush2.xpose.msra.mxu0 0.0
        %1447 = vmatprep.subr.mxu0 0.0
        %1448 = vmatpush2.xpose.msra.mxu0 0.0
        %1449 = vmatprep.subr.mxu0 0.0
        %1450 = vmatpush2.xpose.msra.mxu0 0.0
        %1451 = vmatprep.subr.mxu0 0.0
        %1452 = vmatpush2.xpose.msra.mxu0 0.0
        %1453 = vmatprep.subr.mxu0 0.0
        %1454 = vmatpush2.xpose.msra.mxu0 0.0
        %1455 = vmatprep.subr.mxu0 0.0
        %1456 = vmatpush2.xpose.msra.mxu0 0.0
        %1457 = vmatprep.subr.mxu0 0.0
        %1458 = vmatpush2.xpose.msra.mxu0 0.0
        %1459 = vmatprep.subr.mxu0 0.0
        %1460 = vmatpush2.xpose.msra.mxu0 0.0
        %1461 = vmatprep.subr.mxu0 0.0
        %1462 = vmatpush2.xpose.msra.mxu0 0.0
        %1463 = vmatprep.subr.mxu0 0.0
        %1464 = vmatpush2.xpose.msra.mxu0 0.0
        %1465 = vmatprep.subr.mxu0 0.0
        %1466 = vmatpush2.xpose.msra.mxu0 0.0
        %1467 = vmatprep.subr.mxu0 0.0
        %1468 = vmatpush2.xpose.msra.mxu0 0.0
        %1469 = vmatprep.subr.mxu0 0.0
        %1470 = vmatpush2.xpose.msra.mxu0 0.0
        %1471 = vmatprep.subr.mxu0 0.0
        %1472 = vmatpush2.xpose.msra.mxu0 0.0
        %1473 = vmatprep.mubr.f32.mxu0 0.0
        %1474 = vmatmul.mubr.f32.gmra.mxu0 %v1405
        %v1475 = vpop.f32.mrf.mxu0
        %v1476 = vadd.f32 0.0, %v1475
        %v1477 = vpop.f32.mrf.mxu0
        %1478 = vdwg.mxu0
        %v1479 = vsel %vm655, %v1476, -inf
        %1480 = vmax.xlane.f32.xlu0 %v1479
        %v1481 = vpop.xlane.xlu0 %1480
        %v1482 = vsub.f32 %v1476, %v1481
        %v1483 = vmul.f32 %v1482, 1.442695
        %v1484 = vpow.pop %v1483
        %v1485 = vsel %vm655, %v1484, 0.0
        %1486 = vadd.xlane.f32.xlu0 %v1485
        %v1487 = vpop.xlane.xlu0 %1486
        %1488 = vrot.lane.b32.xlu0 %v499, 108
        %v1489 = vpop.permute.xlu0 %1488
        %v1492 = vsel %vm655, %v1484, 0
        %1494 = vmatprep.subr.mxu0 0.0
        %1495 = vmatpush1.msra.mxu0 0.0
        %1496 = vmatprep.subr.mxu0 0.0
        %1497 = vmatpush1.msra.mxu0 0.0
        %1498 = vmatprep.subr.mxu0 0.0
        %1499 = vmatpush1.msra.mxu0 0.0
        %1500 = vmatprep.subr.mxu0 0.0
        %1501 = vmatpush1.msra.mxu0 0.0
        %1502 = vmatprep.subr.mxu0 0.0
        %1503 = vmatpush1.msra.mxu0 0.0
        %1504 = vmatprep.subr.mxu0 0.0
        %1505 = vmatpush1.msra.mxu0 0.0
        %1506 = vmatprep.subr.mxu0 0.0
        %1507 = vmatpush1.msra.mxu0 0.0
        %1508 = vmatprep.subr.mxu0 0.0
        %1509 = vmatpush1.msra.mxu0 0.0
        %1510 = vmatprep.subr.mxu0 0.0
        %1511 = vmatpush1.msra.mxu0 0.0
        %1512 = vmatprep.subr.mxu0 0.0
        %1513 = vmatpush1.msra.mxu0 0.0
        %1514 = vmatprep.subr.mxu0 0.0
        %1515 = vmatpush1.msra.mxu0 0.0
        %1516 = vmatprep.subr.mxu0 0.0
        %1517 = vmatpush1.msra.mxu0 0.0
        %1518 = vmatprep.subr.mxu0 0.0
        %1519 = vmatpush1.msra.mxu0 0.0
        %1520 = vmatprep.subr.mxu0 0.0
        %1521 = vmatpush1.msra.mxu0 0.0
        %1522 = vmatprep.subr.mxu0 0.0
        %1523 = vmatpush1.msra.mxu0 0.0
        %1524 = vmatprep.subr.mxu0 0.0
        %1525 = vmatpush1.msra.mxu0 %v1489
        %1526 = vmatprep.subr.mxu0 0.0
        %1527 = vmatpush2.msra.mxu0 0.0
        %1528 = vmatprep.subr.mxu0 0.0
        %1529 = vmatpush2.msra.mxu0 0.0
        %1530 = vmatprep.subr.mxu0 0.0
        %1531 = vmatpush2.msra.mxu0 0.0
        %1532 = vmatprep.subr.mxu0 0.0
        %1533 = vmatpush2.msra.mxu0 0.0
        %1534 = vmatprep.subr.mxu0 0.0
        %1535 = vmatpush2.msra.mxu0 0.0
        %1536 = vmatprep.subr.mxu0 0.0
        %1537 = vmatpush2.msra.mxu0 0.0
        %1538 = vmatprep.subr.mxu0 0.0
        %1539 = vmatpush2.msra.mxu0 0.0
        %1540 = vmatprep.subr.mxu0 0.0
        %1541 = vmatpush2.msra.mxu0 0.0
        %1542 = vmatprep.subr.mxu0 0.0
        %1543 = vmatpush2.msra.mxu0 0.0
        %1544 = vmatprep.subr.mxu0 0.0
        %1545 = vmatpush2.msra.mxu0 0.0
        %1546 = vmatprep.subr.mxu0 0.0
        %1547 = vmatpush2.msra.mxu0 0.0
        %1548 = vmatprep.subr.mxu0 0.0
        %1549 = vmatpush2.msra.mxu0 0.0
        %1550 = vmatprep.subr.mxu0 0.0
        %1551 = vmatpush2.msra.mxu0 0.0
        %1552 = vmatprep.subr.mxu0 0.0
        %1553 = vmatpush2.msra.mxu0 0.0
        %1554 = vmatprep.subr.mxu0 0.0
        %1555 = vmatpush2.msra.mxu0 0.0
        %1556 = vmatprep.subr.mxu0 0.0
        %1557 = vmatpush2.msra.mxu0 0.0
        %1558 = vmatprep.mubr.f32.mxu0 0.0
        %1559 = vmatmul.mubr.f32.gmra.mxu0 %v1492
        %v1560 = vpop.f32.mrf.mxu0
        %v1561 = vadd.f32 0.0, %v1560
        %v1562 = vpop.f32.mrf.mxu0
        %1563 = vdwg.mxu0
        %v1564 = vrcp.pop %v1487
        %v1565 = vmul.f32 %v1561, %v1564
        %1566 = vrot.lane.b32.xlu0 %v577, 104
        %v1567 = vpop.permute.xlu0 %1566
        %1568 = vrot.lane.b32.xlu0 %v424, 104
        %v1569 = vpop.permute.xlu0 %1568
        %v1570 = vsel %vm578, %v1567, 0
        %v1572 = vsel %vm578, %v1569, 0
        %1574 = vmatprep.subr.mxu0 0.0
        %1575 = vmatpush1.xpose.msra.mxu0 0.0
        %1576 = vmatprep.subr.mxu0 0.0
        %1577 = vmatpush1.xpose.msra.mxu0 0.0
        %1578 = vmatprep.subr.mxu0 0.0
        %1579 = vmatpush1.xpose.msra.mxu0 0.0
        %1580 = vmatprep.subr.mxu0 0.0
        %1581 = vmatpush1.xpose.msra.mxu0 0.0
        %1582 = vmatprep.subr.mxu0 0.0
        %1583 = vmatpush1.xpose.msra.mxu0 0.0
        %1584 = vmatprep.subr.mxu0 0.0
        %1585 = vmatpush1.xpose.msra.mxu0 0.0
        %1586 = vmatprep.subr.mxu0 0.0
        %1587 = vmatpush1.xpose.msra.mxu0 0.0
        %1588 = vmatprep.subr.mxu0 0.0
        %1589 = vmatpush1.xpose.msra.mxu0 0.0
        %1590 = vmatprep.subr.mxu0 0.0
        %1591 = vmatpush1.xpose.msra.mxu0 0.0
        %1592 = vmatprep.subr.mxu0 0.0
        %1593 = vmatpush1.xpose.msra.mxu0 0.0
        %1594 = vmatprep.subr.mxu0 0.0
        %1595 = vmatpush1.xpose.msra.mxu0 0.0
        %1596 = vmatprep.subr.mxu0 0.0
        %1597 = vmatpush1.xpose.msra.mxu0 0.0
        %1598 = vmatprep.subr.mxu0 0.0
        %1599 = vmatpush1.xpose.msra.mxu0 0.0
        %1600 = vmatprep.subr.mxu0 0.0
        %1601 = vmatpush1.xpose.msra.mxu0 0.0
        %1602 = vmatprep.subr.mxu0 0.0
        %1603 = vmatpush1.xpose.msra.mxu0 0.0
        %1604 = vmatprep.subr.mxu0 0.0
        %1605 = vmatpush1.xpose.msra.mxu0 %v1572
        %1606 = vmatprep.subr.mxu0 0.0
        %1607 = vmatpush2.xpose.msra.mxu0 0.0
        %1608 = vmatprep.subr.mxu0 0.0
        %1609 = vmatpush2.xpose.msra.mxu0 0.0
        %1610 = vmatprep.subr.mxu0 0.0
        %1611 = vmatpush2.xpose.msra.mxu0 0.0
        %1612 = vmatprep.subr.mxu0 0.0
        %1613 = vmatpush2.xpose.msra.mxu0 0.0
        %1614 = vmatprep.subr.mxu0 0.0
        %1615 = vmatpush2.xpose.msra.mxu0 0.0
        %1616 = vmatprep.subr.mxu0 0.0
        %1617 = vmatpush2.xpose.msra.mxu0 0.0
        %1618 = vmatprep.subr.mxu0 0.0
        %1619 = vmatpush2.xpose.msra.mxu0 0.0
        %1620 = vmatprep.subr.mxu0 0.0
        %1621 = vmatpush2.xpose.msra.mxu0 0.0
        %1622 = vmatprep.subr.mxu0 0.0
        %1623 = vmatpush2.xpose.msra.mxu0 0.0
        %1624 = vmatprep.subr.mxu0 0.0
        %1625 = vmatpush2.xpose.msra.mxu0 0.0
        %1626 = vmatprep.subr.mxu0 0.0
        %1627 = vmatpush2.xpose.msra.mxu0 0.0
        %1628 = vmatprep.subr.mxu0 0.0
        %1629 = vmatpush2.xpose.msra.mxu0 0.0
        %1630 = vmatprep.subr.mxu0 0.0
        %1631 = vmatpush2.xpose.msra.mxu0 0.0
        %1632 = vmatprep.subr.mxu0 0.0
        %1633 = vmatpush2.xpose.msra.mxu0 0.0
        %1634 = vmatprep.subr.mxu0 0.0
        %1635 = vmatpush2.xpose.msra.mxu0 0.0
        %1636 = vmatprep.subr.mxu0 0.0
        %1637 = vmatpush2.xpose.msra.mxu0 0.0
        %1638 = vmatprep.mubr.f32.mxu0 0.0
        %1639 = vmatmul.mubr.f32.gmra.mxu0 %v1570
        %v1640 = vpop.f32.mrf.mxu0
        %v1641 = vadd.f32 0.0, %v1640
        %v1642 = vpop.f32.mrf.mxu0
        %1643 = vdwg.mxu0
        %v1644 = vsel %vm655, %v1641, -inf
        %1645 = vmax.xlane.f32.xlu0 %v1644
        %v1646 = vpop.xlane.xlu0 %1645
        %v1647 = vsub.f32 %v1641, %v1646
        %v1648 = vmul.f32 %v1647, 1.442695
        %v1649 = vpow.pop %v1648
        %v1650 = vsel %vm655, %v1649, 0.0
        %1651 = vadd.xlane.f32.xlu0 %v1650
        %v1652 = vpop.xlane.xlu0 %1651
        %1653 = vrot.lane.b32.xlu0 %v499, 104
        %v1654 = vpop.permute.xlu0 %1653
        %v1657 = vsel %vm655, %v1649, 0
        %1659 = vmatprep.subr.mxu0 0.0
        %1660 = vmatpush1.msra.mxu0 0.0
        %1661 = vmatprep.subr.mxu0 0.0
        %1662 = vmatpush1.msra.mxu0 0.0
        %1663 = vmatprep.subr.mxu0 0.0
        %1664 = vmatpush1.msra.mxu0 0.0
        %1665 = vmatprep.subr.mxu0 0.0
        %1666 = vmatpush1.msra.mxu0 0.0
        %1667 = vmatprep.subr.mxu0 0.0
        %1668 = vmatpush1.msra.mxu0 0.0
        %1669 = vmatprep.subr.mxu0 0.0
        %1670 = vmatpush1.msra.mxu0 0.0
        %1671 = vmatprep.subr.mxu0 0.0
        %1672 = vmatpush1.msra.mxu0 0.0
        %1673 = vmatprep.subr.mxu0 0.0
        %1674 = vmatpush1.msra.mxu0 0.0
        %1675 = vmatprep.subr.mxu0 0.0
        %1676 = vmatpush1.msra.mxu0 0.0
        %1677 = vmatprep.subr.mxu0 0.0
        %1678 = vmatpush1.msra.mxu0 0.0
        %1679 = vmatprep.subr.mxu0 0.0
        %1680 = vmatpush1.msra.mxu0 0.0
        %1681 = vmatprep.subr.mxu0 0.0
        %1682 = vmatpush1.msra.mxu0 0.0
        %1683 = vmatprep.subr.mxu0 0.0
        %1684 = vmatpush1.msra.mxu0 0.0
        %1685 = vmatprep.subr.mxu0 0.0
        %1686 = vmatpush1.msra.mxu0 0.0
        %1687 = vmatprep.subr.mxu0 0.0
        %1688 = vmatpush1.msra.mxu0 0.0
        %1689 = vmatprep.subr.mxu0 0.0
        %1690 = vmatpush1.msra.mxu0 %v1654
        %1691 = vmatprep.subr.mxu0 0.0
        %1692 = vmatpush2.msra.mxu0 0.0
        %1693 = vmatprep.subr.mxu0 0.0
        %1694 = vmatpush2.msra.mxu0 0.0
        %1695 = vmatprep.subr.mxu0 0.0
        %1696 = vmatpush2.msra.mxu0 0.0
        %1697 = vmatprep.subr.mxu0 0.0
        %1698 = vmatpush2.msra.mxu0 0.0
        %1699 = vmatprep.subr.mxu0 0.0
        %1700 = vmatpush2.msra.mxu0 0.0
        %1701 = vmatprep.subr.mxu0 0.0
        %1702 = vmatpush2.msra.mxu0 0.0
        %1703 = vmatprep.subr.mxu0 0.0
        %1704 = vmatpush2.msra.mxu0 0.0
        %1705 = vmatprep.subr.mxu0 0.0
        %1706 = vmatpush2.msra.mxu0 0.0
        %1707 = vmatprep.subr.mxu0 0.0
        %1708 = vmatpush2.msra.mxu0 0.0
        %1709 = vmatprep.subr.mxu0 0.0
        %1710 = vmatpush2.msra.mxu0 0.0
        %1711 = vmatprep.subr.mxu0 0.0
        %1712 = vmatpush2.msra.mxu0 0.0
        %1713 = vmatprep.subr.mxu0 0.0
        %1714 = vmatpush2.msra.mxu0 0.0
        %1715 = vmatprep.subr.mxu0 0.0
        %1716 = vmatpush2.msra.mxu0 0.0
        %1717 = vmatprep.subr.mxu0 0.0
        %1718 = vmatpush2.msra.mxu0 0.0
        %1719 = vmatprep.subr.mxu0 0.0
        %1720 = vmatpush2.msra.mxu0 0.0
        %1721 = vmatprep.subr.mxu0 0.0
        %1722 = vmatpush2.msra.mxu0 0.0
        %1723 = vmatprep.mubr.f32.mxu0 0.0
        %1724 = vmatmul.mubr.f32.gmra.mxu0 %v1657
        %v1725 = vpop.f32.mrf.mxu0
        %v1726 = vadd.f32 0.0, %v1725
        %v1727 = vpop.f32.mrf.mxu0
        %1728 = vdwg.mxu0
        %v1729 = vrcp.pop %v1652
        %v1730 = vmul.f32 %v1726, %v1729
        %1731 = vrot.lane.b32.xlu0 %v577, 100
        %v1732 = vpop.permute.xlu0 %1731
        %1733 = vrot.lane.b32.xlu0 %v424, 100
        %v1734 = vpop.permute.xlu0 %1733
        %v1735 = vsel %vm578, %v1732, 0
        %v1737 = vsel %vm578, %v1734, 0
        %1739 = vmatprep.subr.mxu0 0.0
        %1740 = vmatpush1.xpose.msra.mxu0 0.0
        %1741 = vmatprep.subr.mxu0 0.0
        %1742 = vmatpush1.xpose.msra.mxu0 0.0
        %1743 = vmatprep.subr.mxu0 0.0
        %1744 = vmatpush1.xpose.msra.mxu0 0.0
        %1745 = vmatprep.subr.mxu0 0.0
        %1746 = vmatpush1.xpose.msra.mxu0 0.0
        %1747 = vmatprep.subr.mxu0 0.0
        %1748 = vmatpush1.xpose.msra.mxu0 0.0
        %1749 = vmatprep.subr.mxu0 0.0
        %1750 = vmatpush1.xpose.msra.mxu0 0.0
        %1751 = vmatprep.subr.mxu0 0.0
        %1752 = vmatpush1.xpose.msra.mxu0 0.0
        %1753 = vmatprep.subr.mxu0 0.0
        %1754 = vmatpush1.xpose.msra.mxu0 0.0
        %1755 = vmatprep.subr.mxu0 0.0
        %1756 = vmatpush1.xpose.msra.mxu0 0.0
        %1757 = vmatprep.subr.mxu0 0.0
        %1758 = vmatpush1.xpose.msra.mxu0 0.0
        %1759 = vmatprep.subr.mxu0 0.0
        %1760 = vmatpush1.xpose.msra.mxu0 0.0
        %1761 = vmatprep.subr.mxu0 0.0
        %1762 = vmatpush1.xpose.msra.mxu0 0.0
        %1763 = vmatprep.subr.mxu0 0.0
        %1764 = vmatpush1.xpose.msra.mxu0 0.0
        %1765 = vmatprep.subr.mxu0 0.0
        %1766 = vmatpush1.xpose.msra.mxu0 0.0
        %1767 = vmatprep.subr.mxu0 0.0
        %1768 = vmatpush1.xpose.msra.mxu0 0.0
        %1769 = vmatprep.subr.mxu0 0.0
        %1770 = vmatpush1.xpose.msra.mxu0 %v1737
        %1771 = vmatprep.subr.mxu0 0.0
        %1772 = vmatpush2.xpose.msra.mxu0 0.0
        %1773 = vmatprep.subr.mxu0 0.0
        %1774 = vmatpush2.xpose.msra.mxu0 0.0
        %1775 = vmatprep.subr.mxu0 0.0
        %1776 = vmatpush2.xpose.msra.mxu0 0.0
        %1777 = vmatprep.subr.mxu0 0.0
        %1778 = vmatpush2.xpose.msra.mxu0 0.0
        %1779 = vmatprep.subr.mxu0 0.0
        %1780 = vmatpush2.xpose.msra.mxu0 0.0
        %1781 = vmatprep.subr.mxu0 0.0
        %1782 = vmatpush2.xpose.msra.mxu0 0.0
        %1783 = vmatprep.subr.mxu0 0.0
        %1784 = vmatpush2.xpose.msra.mxu0 0.0
        %1785 = vmatprep.subr.mxu0 0.0
        %1786 = vmatpush2.xpose.msra.mxu0 0.0
        %1787 = vmatprep.subr.mxu0 0.0
        %1788 = vmatpush2.xpose.msra.mxu0 0.0
        %1789 = vmatprep.subr.mxu0 0.0
        %1790 = vmatpush2.xpose.msra.mxu0 0.0
        %1791 = vmatprep.subr.mxu0 0.0
        %1792 = vmatpush2.xpose.msra.mxu0 0.0
        %1793 = vmatprep.subr.mxu0 0.0
        %1794 = vmatpush2.xpose.msra.mxu0 0.0
        %1795 = vmatprep.subr.mxu0 0.0
        %1796 = vmatpush2.xpose.msra.mxu0 0.0
        %1797 = vmatprep.subr.mxu0 0.0
        %1798 = vmatpush2.xpose.msra.mxu0 0.0
        %1799 = vmatprep.subr.mxu0 0.0
        %1800 = vmatpush2.xpose.msra.mxu0 0.0
        %1801 = vmatprep.subr.mxu0 0.0
        %1802 = vmatpush2.xpose.msra.mxu0 0.0
        %1803 = vmatprep.mubr.f32.mxu0 0.0
        %1804 = vmatmul.mubr.f32.gmra.mxu0 %v1735
        %v1805 = vpop.f32.mrf.mxu0
        %v1806 = vadd.f32 0.0, %v1805
        %v1807 = vpop.f32.mrf.mxu0
        %1808 = vdwg.mxu0
        %v1809 = vsel %vm655, %v1806, -inf
        %1810 = vmax.xlane.f32.xlu0 %v1809
        %v1811 = vpop.xlane.xlu0 %1810
        %v1812 = vsub.f32 %v1806, %v1811
        %v1813 = vmul.f32 %v1812, 1.442695
        %v1814 = vpow.pop %v1813
        %v1815 = vsel %vm655, %v1814, 0.0
        %1816 = vadd.xlane.f32.xlu0 %v1815
        %v1817 = vpop.xlane.xlu0 %1816
        %1818 = vrot.lane.b32.xlu0 %v499, 100
        %v1819 = vpop.permute.xlu0 %1818
        %v1822 = vsel %vm655, %v1814, 0
        %1824 = vmatprep.subr.mxu0 0.0
        %1825 = vmatpush1.msra.mxu0 0.0
        %1826 = vmatprep.subr.mxu0 0.0
        %1827 = vmatpush1.msra.mxu0 0.0
        %1828 = vmatprep.subr.mxu0 0.0
        %1829 = vmatpush1.msra.mxu0 0.0
        %1830 = vmatprep.subr.mxu0 0.0
        %1831 = vmatpush1.msra.mxu0 0.0
        %1832 = vmatprep.subr.mxu0 0.0
        %1833 = vmatpush1.msra.mxu0 0.0
        %1834 = vmatprep.subr.mxu0 0.0
        %1835 = vmatpush1.msra.mxu0 0.0
        %1836 = vmatprep.subr.mxu0 0.0
        %1837 = vmatpush1.msra.mxu0 0.0
        %1838 = vmatprep.subr.mxu0 0.0
        %1839 = vmatpush1.msra.mxu0 0.0
        %1840 = vmatprep.subr.mxu0 0.0
        %1841 = vmatpush1.msra.mxu0 0.0
        %1842 = vmatprep.subr.mxu0 0.0
        %1843 = vmatpush1.msra.mxu0 0.0
        %1844 = vmatprep.subr.mxu0 0.0
        %1845 = vmatpush1.msra.mxu0 0.0
        %1846 = vmatprep.subr.mxu0 0.0
        %1847 = vmatpush1.msra.mxu0 0.0
        %1848 = vmatprep.subr.mxu0 0.0
        %1849 = vmatpush1.msra.mxu0 0.0
        %1850 = vmatprep.subr.mxu0 0.0
        %1851 = vmatpush1.msra.mxu0 0.0
        %1852 = vmatprep.subr.mxu0 0.0
        %1853 = vmatpush1.msra.mxu0 0.0
        %1854 = vmatprep.subr.mxu0 0.0
        %1855 = vmatpush1.msra.mxu0 %v1819
        %1856 = vmatprep.subr.mxu0 0.0
        %1857 = vmatpush2.msra.mxu0 0.0
        %1858 = vmatprep.subr.mxu0 0.0
        %1859 = vmatpush2.msra.mxu0 0.0
        %1860 = vmatprep.subr.mxu0 0.0
        %1861 = vmatpush2.msra.mxu0 0.0
        %1862 = vmatprep.subr.mxu0 0.0
        %1863 = vmatpush2.msra.mxu0 0.0
        %1864 = vmatprep.subr.mxu0 0.0
        %1865 = vmatpush2.msra.mxu0 0.0
        %1866 = vmatprep.subr.mxu0 0.0
        %1867 = vmatpush2.msra.mxu0 0.0
        %1868 = vmatprep.subr.mxu0 0.0
        %1869 = vmatpush2.msra.mxu0 0.0
        %1870 = vmatprep.subr.mxu0 0.0
        %1871 = vmatpush2.msra.mxu0 0.0
        %1872 = vmatprep.subr.mxu0 0.0
        %1873 = vmatpush2.msra.mxu0 0.0
        %1874 = vmatprep.subr.mxu0 0.0
        %1875 = vmatpush2.msra.mxu0 0.0
        %1876 = vmatprep.subr.mxu0 0.0
        %1877 = vmatpush2.msra.mxu0 0.0
        %1878 = vmatprep.subr.mxu0 0.0
        %1879 = vmatpush2.msra.mxu0 0.0
        %1880 = vmatprep.subr.mxu0 0.0
        %1881 = vmatpush2.msra.mxu0 0.0
        %1882 = vmatprep.subr.mxu0 0.0
        %1883 = vmatpush2.msra.mxu0 0.0
        %1884 = vmatprep.subr.mxu0 0.0
        %1885 = vmatpush2.msra.mxu0 0.0
        %1886 = vmatprep.subr.mxu0 0.0
        %1887 = vmatpush2.msra.mxu0 0.0
        %1888 = vmatprep.mubr.f32.mxu0 0.0
        %1889 = vmatmul.mubr.f32.gmra.mxu0 %v1822
        %v1890 = vpop.f32.mrf.mxu0
        %v1891 = vadd.f32 0.0, %v1890
        %v1892 = vpop.f32.mrf.mxu0
        %1893 = vdwg.mxu0
        %v1894 = vrcp.pop %v1817
        %v1895 = vmul.f32 %v1891, %v1894
        %1897 = vrot.lane.b32.xlu0 %v905, 4
        %v1898 = vpop.permute.xlu0 %1897
        %1901 = vrot.lane.b32.xlu0 %v1070, 8
        %v1902 = vpop.permute.xlu0 %1901
        %1905 = vrot.lane.b32.xlu0 %v1235, 12
        %v1906 = vpop.permute.xlu0 %1905
        %1909 = vrot.lane.b32.xlu0 %v1400, 16
        %v1910 = vpop.permute.xlu0 %1909
        %1913 = vrot.lane.b32.xlu0 %v1565, 20
        %v1914 = vpop.permute.xlu0 %1913
        %1917 = vrot.lane.b32.xlu0 %v1730, 24
        %v1918 = vpop.permute.xlu0 %1917
        %1921 = vrot.lane.b32.xlu0 %v1895, 28
        %v1922 = vpop.permute.xlu0 %1921
        %v1924 = vsel %vm578, %v739, %v1898
        %v1925 = vsel %vm655, %v1924, %v1902
        %vm1926 = vcmask 97280
        %v1927 = vsel %vm1926, %v1925, %v1906
        %vm1928 = vcmask 130048
        %v1929 = vsel %vm1928, %v1927, %v1910
        %vm1930 = vcmask 162816
        %v1931 = vsel %vm1930, %v1929, %v1914
        %vm1932 = vcmask 195584
        %v1933 = vsel %vm1932, %v1931, %v1918
        %vm1934 = vcmask 228352
        %v1935 = vsel %vm1934, %v1933, %v1922
        %s1936 = scalar_lea.vmem [#allocation11], %s347
        %v1937 = vld [vmem:[%s1936] sm:$0xff]
        %v1938 = vld [vmem:[%s1936 + $0x8] sm:$0xff]
        %v1939 = vld [vmem:[%s1936 + $0x10] sm:$0xff]
        %v1940 = vld [vmem:[%s1936 + $0x18] sm:$0xff]
        %v1942 = vsel %vm353, %v1935, 0
        %1944 = vmatprep.subr.mxu0 0.0
        %1945 = vmatpush1.msra.mxu0 0.0
        %1946 = vmatprep.subr.mxu0 0.0
        %1947 = vmatpush1.msra.mxu0 0.0
        %1948 = vmatprep.subr.mxu0 0.0
        %1949 = vmatpush1.msra.mxu0 0.0
        %1950 = vmatprep.subr.mxu0 0.0
        %1951 = vmatpush1.msra.mxu0 0.0
        %1952 = vmatprep.subr.mxu0 0.0
        %1953 = vmatpush1.msra.mxu0 0.0
        %1954 = vmatprep.subr.mxu0 0.0
        %1955 = vmatpush1.msra.mxu0 0.0
        %1956 = vmatprep.subr.mxu0 0.0
        %1957 = vmatpush1.msra.mxu0 0.0
        %1958 = vmatprep.subr.mxu0 0.0
        %1959 = vmatpush1.msra.mxu0 0.0
        %1960 = vmatprep.subr.mxu0 0.0
        %1961 = vmatpush1.msra.mxu0 0.0
        %1962 = vmatprep.subr.mxu0 0.0
        %1963 = vmatpush1.msra.mxu0 0.0
        %1964 = vmatprep.subr.mxu0 0.0
        %1965 = vmatpush1.msra.mxu0 0.0
        %1966 = vmatprep.subr.mxu0 0.0
        %1967 = vmatpush1.msra.mxu0 0.0
        %1968 = vmatprep.subr.mxu0 0.0
        %1969 = vmatpush1.msra.mxu0 %v1940
        %1970 = vmatprep.subr.mxu0 0.0
        %1971 = vmatpush1.msra.mxu0 %v1939
        %1972 = vmatprep.subr.mxu0 0.0
        %1973 = vmatpush1.msra.mxu0 %v1938
        %1974 = vmatprep.subr.mxu0 0.0
        %1975 = vmatpush1.msra.mxu0 %v1937
        %1976 = vmatprep.subr.mxu0 0.0
        %1977 = vmatpush2.msra.mxu0 0.0
        %1978 = vmatprep.subr.mxu0 0.0
        %1979 = vmatpush2.msra.mxu0 0.0
        %1980 = vmatprep.subr.mxu0 0.0
        %1981 = vmatpush2.msra.mxu0 0.0
        %1982 = vmatprep.subr.mxu0 0.0
        %1983 = vmatpush2.msra.mxu0 0.0
        %1984 = vmatprep.subr.mxu0 0.0
        %1985 = vmatpush2.msra.mxu0 0.0
        %1986 = vmatprep.subr.mxu0 0.0
        %1987 = vmatpush2.msra.mxu0 0.0
        %1988 = vmatprep.subr.mxu0 0.0
        %1989 = vmatpush2.msra.mxu0 0.0
        %1990 = vmatprep.subr.mxu0 0.0
        %1991 = vmatpush2.msra.mxu0 0.0
        %1992 = vmatprep.subr.mxu0 0.0
        %1993 = vmatpush2.msra.mxu0 0.0
        %1994 = vmatprep.subr.mxu0 0.0
        %1995 = vmatpush2.msra.mxu0 0.0
        %1996 = vmatprep.subr.mxu0 0.0
        %1997 = vmatpush2.msra.mxu0 0.0
        %1998 = vmatprep.subr.mxu0 0.0
        %1999 = vmatpush2.msra.mxu0 0.0
        %2000 = vmatprep.subr.mxu0 0.0
        %2001 = vmatpush2.msra.mxu0 0.0
        %2002 = vmatprep.subr.mxu0 0.0
        %2003 = vmatpush2.msra.mxu0 0.0
        %2004 = vmatprep.subr.mxu0 0.0
        %2005 = vmatpush2.msra.mxu0 0.0
        %2006 = vmatprep.subr.mxu0 0.0
        %2007 = vmatpush2.msra.mxu0 0.0
        %2008 = vmatprep.mubr.f32.mxu0 0.0
        %2009 = vmatmul.mubr.f32.gmra.mxu0 %v1942
        %v2010 = vpop.f32.mrf.mxu0
        %v2011 = vadd.f32 0.0, %v2010
        %v2012 = vpop.f32.mrf.mxu0
        %2013 = vdwg.mxu0
        %p2014 = scmp.eq.s32.totalorder %s32, 0
        // Predicated region
        $region65: #{tpu_custom_call.1} parent=43 // pred_check
          %p2015 = pneg %p2014
        $region66: #{tpu_custom_call.1} parent=43 // pred_check_branch
          %2017 = sbr.rel (%p2015) target = $region68
        $region67: #{tpu_custom_call.1} parent=43 // pred_region
          %2018 = vst.msk [vmem:[#allocation2] sm:$0xff] %vm353, 0.0
        $region68: #{tpu_custom_call.1} parent=43 // pred_fallthru
          _
        %v2019 = vld [vmem:[#allocation2] sm:$0xff]
        %v2020 = vadd.f32 %v2019, %v2011
        %2021 = vst.msk [vmem:[#allocation2] sm:$0xff] %vm353, %v2020
        // Predicated region
        $region69: #{tpu_custom_call.1} parent=43 // pred_check
          %p2022 = pneg %p2014
        $region70: #{tpu_custom_call.1} parent=43 // pred_check_branch
          %2024 = sbr.rel (%p2022) target = $region72
        $region71: #{tpu_custom_call.1} parent=43 // pred_region
          %v2025 = vld [vmem:[#allocation2] sm:$0xff]
          %v2026 = vld [vmem:[%s5] sm:$0x1]
          %v2028 = vlaneseq
          %v2029 = vshrl.u32 %v2028, 7
          %v2030 = vsub.s32 0, %v2029
          %v2031 = vrot.slane %v2026, %v2030
          %v2033 = vadd.f32 %v2025, %v2031
          %2034 = vst.msk [vmem:[%s345] sm:$0xff] %vm353, %v2033
        $region72: #{tpu_custom_call.1} parent=43 // pred_fallthru
          _
        %s2035 = sand.u32 %s185, 1
        %s2036 = scalar_lea.sflag [#allocation5], %s2035
        %s2037 = sand.u32 %s185, 1
        %s2038 = smul.addr %s2037, 8
        %s2039 = scalar_lea.vmem [#allocation12], %s2038
        // Predicated region
        $region73: #{tpu_custom_call.1} parent=43 // pred_check
          %p2040 = pneg %p195
        $region74: #{tpu_custom_call.1} parent=43 // pred_check_branch
          %2042 = sbr.rel (%p2040) target = $region76
        $region75: #{tpu_custom_call.1} parent=43 // pred_region
          %s2044 = ssub.s32 128, 128
          %2045 = vsyncadd %s2036, %s2044
          %s2046 = sadd.s32 %s31, %s30
          %s2047 = smul.addr %s2046, 128
          %s2048 = scalar_lea.hbm %s6, %s2047
          %s2050 = sshll.u32 %s2039, 4
          %s2051 = int_to_ptr.vmem [resolvable:$true] %s2050
          %2053 = dma.vmem_to_hbm [thread:$0]  %s2051, 128, %s2048, %s2036
        $region76: #{tpu_custom_call.1} parent=43 // pred_fallthru
          _
      $region44: #{tpu_custom_call.1} parent=5 // pred_fallthru
        _
      %p2054 = scmp.le.s32.totalorder 2, %s20
      // Predicated region
      $region77: #{tpu_custom_call.1} parent=5 // pred_check
        %p2055 = pneg %p2054
      $region78: #{tpu_custom_call.1} parent=5 // pred_check_branch
        %2057 = sbr.rel (%p2055) target = $region80
      $region79: #{tpu_custom_call.1} parent=5 // pred_region
        %s2058 = ssub.s32 %s20, 2
        // Predicated region
        $region81: #{tpu_custom_call.1} parent=79 // pred_check
          %p2059 = pneg %p201
        $region82: #{tpu_custom_call.1} parent=79 // pred_check_branch
          %2061 = sbr.rel (%p2059) target = $region84
        $region83: #{tpu_custom_call.1} parent=79 // pred_region
          %s2062 = sand.u32 %s186, 1
          %s2063 = scalar_lea.sflag [#allocation5], %s2062
          %s2064 = sand.u32 %s186, 1
          %s2065 = smul.addr %s2064, 8
          %s2066 = scalar_lea.vmem [#allocation12], %s2065
          %2067 = dma.done %s2063, 128
        $region84: #{tpu_custom_call.1} parent=79 // pred_fallthru
          _
      $region80: #{tpu_custom_call.1} parent=5 // pred_fallthru
        _
    $region6: #{tpu_custom_call.1} parent=1 // loop_footer
      %s24 = sadd.s32 1, %s20
    $region7: #{tpu_custom_call.1} parent=1 // loop_footer_branch
      %19 = sbr.rel target = $region3
    $region8: #{tpu_custom_call.1} parent=1 // loop_exit
      _
    %2068 = vsyncpa [#allocation4], 1
    %s2069 = scalar_lea.sflag [#allocation4], 1
    %2070 = vsyncpa %s2069, 1
    %2071 = vsyncpa [#allocation7], 1
    %2072 = vsyncpa [#allocation10], 1
    %2073 = vsyncpa [#allocation5], 1
    %s2074 = scalar_lea.sflag [#allocation5], 1
    %2075 = vsyncpa %s2074, 1

</llo_original>
